<compile_context>
chip_gen: v7x
topology: tpu7x:2x2x1
jax: 0.10.0
libtpu: 0.0.40
codegen_flags: <defaults>
</compile_context>

<pallas_src>
import functools
import math

import jax
import jax.numpy as jnp
from jax.experimental import pallas as pl
from jax.experimental.pallas import tpu as pltpu


def _layer_norm(y, gamma, beta, eps=1e-5):
    mu = jnp.mean(y, axis=-1, keepdims=True)
    var = jnp.mean((y - mu) ** 2, axis=-1, keepdims=True)
    return (y - mu) * jax.lax.rsqrt(var + eps) * gamma + beta


# ----------------------------------------------------------------------------
# Fused kernel: one grid step == one nn.TransformerEncoderLayer applied to one
# batch tile.  Activations stay resident in the output block across the
# (serial, innermost) layer axis.
# ----------------------------------------------------------------------------
def _fused_encoder_kernel(
    x_ref,        # (Bt, S, D)   f32  embeddings+PE, read only at layer 0
    mask_ref,     # (S, S)       f32  additive causal mask (constant block)
    wqkv_ref,     # (1, D, 3D)   bf16 in_proj_weight.T (Q cols pre-scaled)
    wo_ref,       # (1, D, D)    bf16 out_proj.weight.T
    w1_ref,       # (1, D, FF)   bf16 linear1.weight.T
    w2_ref,       # (1, FF, D)   bf16 linear2.weight.T
    small_ref,    # (1, 8, Kmax) f32  packed biases + LN gamma/beta
    out_ref,      # (Bt, S, D)   f32  resident activation / final output
    *,
    num_heads: int,
):
    layer = pl.program_id(1)

    @pl.when(layer == 0)
    def _():
        out_ref[...] = x_ref[...]

    Bt, S, D = out_ref.shape
    H = num_heads
    hd = D // H
    BS = Bt * S
    FF = w1_ref.shape[-1]

    # Packed small per-layer params (row layout fixed at host-prep time).
    small = small_ref[0]                      # (8, Kmax) f32
    b_qkv = small[0:1, : 3 * D]               # (1, 3D)
    b_o = small[1:2, :D]
    g1 = small[2:3, :D]
    be1 = small[3:4, :D]
    b_f1 = small[4:5, :FF]
    b_f2 = small[5:6, :D]
    g2 = small[6:7, :D]
    be2 = small[7:8, :D]

    x = out_ref[...].reshape(BS, D)           # resident activation, f32

    # ---- QKV projection (bf16 MXU inputs, f32 accumulation) ------------------
    # 1/sqrt(hd) is pre-folded into the Q columns of wqkv / b_qkv on the host.
    qkv = (
        jnp.dot(x.astype(jnp.bfloat16), wqkv_ref[0],
                preferred_element_type=jnp.float32)
        + b_qkv
    )                                          # (BS, 3D) f32
    q = qkv[:, :D].reshape(Bt, S, D).astype(jnp.bfloat16)
    k = qkv[:, D:2 * D].reshape(Bt, S, D).astype(jnp.bfloat16)
    v = qkv[:, 2 * D:].reshape(Bt, S, D).astype(jnp.bfloat16)

    mask = mask_ref[...]                       # (S, S); broadcasts in the add

    # ---- per-head attention ---------------------------------------------------
    # TODO(synk): a single 'bqhd,bkhd->bhqk' batched einsum (two batch dims /
    # a 4-D transpose) is the next step but is not reliably lowered by Mosaic;
    # the static H-way loop is kept (H is small), and the *output projection*
    # below is now one contraction-dense (BS,D)@(D,D) matmul instead of H
    # per-head K=hd matmuls.
    heads = []
    for h in range(H):
        sl = slice(h * hd, (h + 1) * hd)
        s = jnp.einsum("bqd,bkd->bqk", q[:, :, sl], k[:, :, sl],
                       preferred_element_type=jnp.float32)       # (Bt,S,S) f32
        s = s + mask                                              # broadcast add
        s = s - jnp.max(s, axis=-1, keepdims=True)                # f32 softmax
        p = jnp.exp(s)
        p = p * pl.reciprocal(jnp.sum(p, axis=-1, keepdims=True))  # exact
        heads.append(
            jnp.einsum("bqk,bkd->bqd", p.astype(jnp.bfloat16), v[:, :, sl],
                       preferred_element_type=jnp.float32))       # (Bt,S,hd)
    o = jnp.concatenate(heads, axis=-1).reshape(BS, D)            # (BS, D)

    attn = (
        jnp.dot(o.astype(jnp.bfloat16), wo_ref[0],
                preferred_element_type=jnp.float32)
        + b_o
    )

    # ---- residual + LayerNorm 1 (f32) ----------------------------------------
    h1 = _layer_norm(x + attn, g1, be1)

    # ---- feed-forward (ReLU) --------------------------------------------------
    # TODO(synk): at realistic FF sizes on v7x, chunk the (BS, FF) intermediate
    # over rows / FF columns to bound peak VMEM; unnecessary at these shapes.
    ff = (
        jnp.dot(h1.astype(jnp.bfloat16), w1_ref[0],
                preferred_element_type=jnp.float32)
        + b_f1
    )
    ff = jnp.maximum(ff, 0.0)
    ff = (
        jnp.dot(ff.astype(jnp.bfloat16), w2_ref[0],
                preferred_element_type=jnp.float32)
        + b_f2
    )

    # ---- residual + LayerNorm 2 ----------------------------------------------
    out_ref[...] = _layer_norm(h1 + ff, g2, be2).reshape(Bt, S, D)


def transformer_encoder(x, layer_weights, num_heads, *, batch_tile=None):
    """Full TransformerEncoder stack as ONE fused pallas_call.

    x: (B, S, D) float32
    layer_weights: (wqkv, wo, w1, w2, small), each stacked over layers.
    """
    B, S, D = x.shape
    wqkv, wo, w1, w2, small = layer_weights
    num_layers = wqkv.shape[0]
    FF = w1.shape[-1]
    kmax = small.shape[-1]

    if batch_tile is None:
        # >=2 batch tiles when possible so v7x's second TensorCore has work.
        batch_tile = B // 2 if (B >= 2 and B % 2 == 0) else B
    assert B % batch_tile == 0
    nb = B // batch_tile

    # Additive causal mask. Large finite negative instead of -inf (NaN-safe);
    # identical softmax result since the diagonal is unmasked.
    row = jnp.arange(S)[:, None]
    col = jnp.arange(S)[None, :]
    mask = jnp.where(col > row, -1e30, 0.0).astype(jnp.float32)

    kernel = functools.partial(_fused_encoder_kernel, num_heads=num_heads)

    # VMEM budget: 2x (double-buffered) per-layer weights + resident
    # activation blocks + rough f32 intermediates, clamped to [32, 64] MiB
    # (64 MiB = v7x physical VMEM).
    w_bytes = 2 * (D * 3 * D + D * D + D * FF + FF * D) + 4 * 8 * kmax
    act_bytes = 4 * batch_tile * S * D
    inter_bytes = (4 * batch_tile * S * (3 * D + FF + 6 * D)
                   + 4 * batch_tile * num_heads * S * S)
    vmem_limit = int(min(max(2 * w_bytes + 4 * act_bytes + inter_bytes
                             + (1 << 20), 32 << 20), 64 << 20))

    out = pl.pallas_call(
        kernel,
        out_shape=jax.ShapeDtypeStruct((B, S, D), jnp.float32),
        grid=(nb, num_layers),
        in_specs=[
            pl.BlockSpec((batch_tile, S, D), lambda b, l: (b, 0, 0)),
            pl.BlockSpec((S, S), lambda b, l: (0, 0)),
            pl.BlockSpec((1, D, 3 * D), lambda b, l: (l, 0, 0)),
            pl.BlockSpec((1, D, D), lambda b, l: (l, 0, 0)),
            pl.BlockSpec((1, D, FF), lambda b, l: (l, 0, 0)),
            pl.BlockSpec((1, FF, D), lambda b, l: (l, 0, 0)),
            pl.BlockSpec((1, 8, kmax), lambda b, l: (l, 0, 0)),
        ],
        out_specs=pl.BlockSpec((batch_tile, S, D), lambda b, l: (b, 0, 0)),
        compiler_params=pltpu.CompilerParams(
            dimension_semantics=("parallel", "arbitrary"),
            vmem_limit_bytes=vmem_limit,
        ),
    )(x, mask, wqkv, wo, w1, w2, small)
    return out


# ----------------------------------------------------------------------------
# Model glue (embedding lookup, positional encoding) in plain JAX.
# ----------------------------------------------------------------------------
def create_positional_encoding(max_len, d_model):
    position = jnp.arange(max_len, dtype=jnp.float32)[:, None]
    div_term = jnp.exp(
        jnp.arange(0, d_model, 2, dtype=jnp.float32)
        * -(math.log(10000.0) / d_model))
    pe = jnp.zeros((max_len, d_model), dtype=jnp.float32)
    pe = pe.at[:, 0::2].set(jnp.sin(position * div_term))
    pe = pe.at[:, 1::2].set(jnp.cos(position * div_term))
    return pe                                       # (max_len, d_model)


def init_params(key, d_model, vocab_size, ff_size, num_layers, num_heads):
    hd = d_model // num_heads
    scale = 1.0 / math.sqrt(hd)
    kmax = max(3 * d_model, ff_size)

    def nrm(k, shape, std=0.02):
        return jax.random.normal(k, shape, dtype=jnp.float32) * std

    keys = jax.random.split(key, 1 + num_layers * 4 + 1)
    params = {"embedding": nrm(keys[0], (vocab_size, d_model))}

    wqkv_l, wo_l, w1_l, w2_l, small_l = [], [], [], [], []
    for l in range(num_layers):
        k0, k1, k2, k3 = keys[1 + 4 * l: 1 + 4 * (l + 1)]
        in_proj = nrm(k0, (3 * d_model, d_model))     # PyTorch in_proj_weight
        out_proj = nrm(k1, (d_model, d_model))        # out_proj.weight
        lin1 = nrm(k2, (ff_size, d_model))            # linear1.weight
        lin2 = nrm(k3, (d_model, ff_size))            # linear2.weight

        in_proj_b = jnp.zeros((3 * d_model,), jnp.float32)
        out_b = jnp.zeros((d_model,), jnp.float32)
        lin1_b = jnp.zeros((ff_size,), jnp.float32)
        lin2_b = jnp.zeros((d_model,), jnp.float32)
        g1 = jnp.ones((d_model,), jnp.float32)
        be1 = jnp.zeros((d_model,), jnp.float32)
        g2 = jnp.ones((d_model,), jnp.float32)
        be2 = jnp.zeros((d_model,), jnp.float32)

        # Fold 1/sqrt(hd) into the Q rows of in_proj (and its bias) so the
        # kernel never multiplies Q by the scale.
        q_scale = jnp.concatenate(
            [jnp.full((d_model,), scale, jnp.float32),
             jnp.ones((2 * d_model,), jnp.float32)])
        wqkv = (in_proj * q_scale[:, None]).T.astype(jnp.bfloat16)   # (D, 3D)
        bqkv = in_proj_b * q_scale

        def pad(v):
            return jnp.pad(v, (0, kmax - v.shape[0]))

        small = jnp.stack([pad(bqkv), pad(out_b), pad(g1), pad(be1),
                           pad(lin1_b), pad(lin2_b), pad(g2), pad(be2)])

        wqkv_l.append(wqkv)
        wo_l.append(out_proj.T.astype(jnp.bfloat16))                 # (D, D)
        w1_l.append(lin1.T.astype(jnp.bfloat16))                     # (D, FF)
        w2_l.append(lin2.T.astype(jnp.bfloat16))                     # (FF, D)
        small_l.append(small)                                        # (8,Kmax)

    params["layers"] = (jnp.stack(wqkv_l), jnp.stack(wo_l),
                        jnp.stack(w1_l), jnp.stack(w2_l),
                        jnp.stack(small_l))
    # out_fc exists in the module but forward() never applies it; kept for parity.
    params["out_fc_w"] = nrm(keys[-1], (vocab_size, d_model))
    params["out_fc_b"] = jnp.zeros((vocab_size,), jnp.float32)
    return params


def multi_layer_transformer_forward(tokens, params, *, num_heads,
                                    max_sequence_length):
    """Equivalent of MultiLayerTransformer.forward (returns encoder output)."""
    B, S = tokens.shape
    d_model = params["embedding"].shape[1]
    x = jnp.take(params["embedding"], tokens, axis=0)        # (B, S, D)
    pe = create_positional_encoding(S, d_model)               # (S, D)
    x = x + pe[None, :max_sequence_length, :]
    x = transformer_encoder(x, params["layers"], num_heads)
    # TODO(synk): forward() also materializes a .cpu().numpy() copy of the
    # squeezed output purely as a side effect; nothing to translate.
    return x


if __name__ == "__main__":
    # Small shapes consistent with the module.
    d_model = 32
    vocab_size = 50
    ff_size = 64
    num_layers = 2
    num_heads = 4
    max_sequence_length = 8
    batch = 2
    seq = 8

    key = jax.random.PRNGKey(0)
    k_tok, k_par = jax.random.split(key)
    tokens = jax.random.randint(k_tok, (batch, seq), 0, vocab_size,
                                dtype=jnp.int32)
    params = init_params(k_par, d_model, vocab_size, ff_size, num_layers,
                         num_heads)

    out = multi_layer_transformer_forward(
        tokens, params,
        num_heads=num_heads,
        max_sequence_length=max_sequence_length,
    )
    out = jax.block_until_ready(out)
    assert out.shape == (batch, seq, d_model)
    assert bool(jnp.all(jnp.isfinite(out)))
    print("KERNEL_OK")
</pallas_src>

<mosaic_0001>
module attributes {stable_mosaic.version = 11 : i64} {
  func.func @_fused_encoder_kernel(%arg0: i32, %arg1: i32, %arg2: memref<1x8x32xf32, #tpu.memory_space<vmem>>, %arg3: memref<8x8xf32, #tpu.memory_space<vmem>>, %arg4: memref<1x32x96xbf16, #tpu.memory_space<vmem>>, %arg5: memref<1x32x32xbf16, #tpu.memory_space<vmem>>, %arg6: memref<1x32x64xbf16, #tpu.memory_space<vmem>>, %arg7: memref<1x64x32xbf16, #tpu.memory_space<vmem>>, %arg8: memref<1x8x96xf32, #tpu.memory_space<vmem>>, %arg9: memref<1x8x32xf32, #tpu.memory_space<vmem>>) attributes {dimension_semantics = [#tpu.dimension_semantics<parallel>, #tpu.dimension_semantics<arbitrary>], iteration_bounds = array<i64: 2, 2>, scalar_prefetch = 0 : i64, scratch_operands = 0 : i64, tpu.core_type = #tpu.core_type<tc>, window_params = [{transform_indices = @transform_0, window_bounds = array<i64: 1, 8, 32>}, {pipeline_mode = #tpu.pipeline_mode<synchronous>, transform_indices = @transform_1, window_bounds = array<i64: 8, 8>}, {transform_indices = @transform_2, window_bounds = array<i64: 1, 32, 96>}, {transform_indices = @transform_3, window_bounds = array<i64: 1, 32, 32>}, {transform_indices = @transform_4, window_bounds = array<i64: 1, 32, 64>}, {transform_indices = @transform_5, window_bounds = array<i64: 1, 64, 32>}, {transform_indices = @transform_6, window_bounds = array<i64: 1, 8, 96>}, {transform_indices = @transform_7, window_bounds = array<i64: 1, 8, 32>}]} {
    %c0_i32 = arith.constant 0 : i32
    %0 = arith.cmpi eq, %arg1, %c0_i32 : i32
    %1 = arith.extui %0 : i1 to i32
    %c0_i32_0 = arith.constant 0 : i32
    %2 = arith.cmpi ne, %1, %c0_i32_0 : i32
    scf.if %2 {
      %c0_53 = arith.constant 0 : index
      %c0_54 = arith.constant 0 : index
      %c0_55 = arith.constant 0 : index
      %173 = vector.load %arg2[%c0_53, %c0_54, %c0_55] : memref<1x8x32xf32, #tpu.memory_space<vmem>>, vector<1x8x32xf32>
      %c0_56 = arith.constant 0 : index
      %c0_57 = arith.constant 0 : index
      %c0_58 = arith.constant 0 : index
      %174 = vector.load %arg9[%c0_56, %c0_57, %c0_58] : memref<1x8x32xf32, #tpu.memory_space<vmem>>, vector<1x8x32xf32>
      tpu.vector_store %arg9[%c0_56, %c0_57, %c0_58], %173 {strides = array<i32>} : memref<1x8x32xf32, #tpu.memory_space<vmem>>, vector<1x8x32xf32>,
    } else {
    }
    %c0 = arith.constant 0 : index
    %c0_1 = arith.constant 0 : index
    %c0_2 = arith.constant 0 : index
    %3 = vector.load %arg8[%c0, %c0_1, %c0_2] : memref<1x8x96xf32, #tpu.memory_space<vmem>>, vector<1x8x96xf32>
    %4 = vector.shape_cast %3 : vector<1x8x96xf32> to vector<8x96xf32>
    %5 = vector.extract_strided_slice %4 {offsets = [0, 0], sizes = [1, 96], strides = [1, 1]} : vector<8x96xf32> to vector<1x96xf32>
    %6 = vector.extract_strided_slice %4 {offsets = [1, 0], sizes = [1, 32], strides = [1, 1]} : vector<8x96xf32> to vector<1x32xf32>
    %7 = vector.extract_strided_slice %4 {offsets = [2, 0], sizes = [1, 32], strides = [1, 1]} : vector<8x96xf32> to vector<1x32xf32>
    %8 = vector.extract_strided_slice %4 {offsets = [3, 0], sizes = [1, 32], strides = [1, 1]} : vector<8x96xf32> to vector<1x32xf32>
    %9 = vector.extract_strided_slice %4 {offsets = [4, 0], sizes = [1, 64], strides = [1, 1]} : vector<8x96xf32> to vector<1x64xf32>
    %10 = vector.extract_strided_slice %4 {offsets = [5, 0], sizes = [1, 32], strides = [1, 1]} : vector<8x96xf32> to vector<1x32xf32>
    %11 = vector.extract_strided_slice %4 {offsets = [6, 0], sizes = [1, 32], strides = [1, 1]} : vector<8x96xf32> to vector<1x32xf32>
    %12 = vector.extract_strided_slice %4 {offsets = [7, 0], sizes = [1, 32], strides = [1, 1]} : vector<8x96xf32> to vector<1x32xf32>
    %c0_3 = arith.constant 0 : index
    %c0_4 = arith.constant 0 : index
    %c0_5 = arith.constant 0 : index
    %13 = vector.load %arg9[%c0_3, %c0_4, %c0_5] : memref<1x8x32xf32, #tpu.memory_space<vmem>>, vector<1x8x32xf32>
    %14 = vector.shape_cast %13 : vector<1x8x32xf32> to vector<8x32xf32>
    %15 = arith.truncf %14 : vector<8x32xf32> to vector<8x32xbf16>
    %c0_6 = arith.constant 0 : index
    %c0_7 = arith.constant 0 : index
    %c0_8 = arith.constant 0 : index
    %16 = vector.load %arg4[%c0_6, %c0_7, %c0_8] : memref<1x32x96xbf16, #tpu.memory_space<vmem>>, vector<1x32x96xbf16>
    %17 = vector.shape_cast %16 : vector<1x32x96xbf16> to vector<32x96xbf16>
    %cst = arith.constant dense<0.000000e+00> : vector<8x96xf32>
    %18 = tpu.matmul %15, %17, %cst {dimension_numbers = #tpu.dot_dimension_numbers<[1], [0], [0], [1], [0, 0, 1, 1], [], []>} : vector<8x32xbf16>, vector<32x96xbf16>, vector<8x96xf32> -> vector<8x96xf32>
    %19 = vector.broadcast %5 : vector<1x96xf32> to vector<8x96xf32>
    %20 = arith.addf %18, %19 : vector<8x96xf32>
    %21 = vector.extract_strided_slice %20 {offsets = [0, 0], sizes = [8, 32], strides = [1, 1]} : vector<8x96xf32> to vector<8x32xf32>
    %22 = vector.shape_cast %21 : vector<8x32xf32> to vector<1x8x32xf32>
    %23 = arith.truncf %22 : vector<1x8x32xf32> to vector<1x8x32xbf16>
    %24 = vector.extract_strided_slice %20 {offsets = [0, 32], sizes = [8, 32], strides = [1, 1]} : vector<8x96xf32> to vector<8x32xf32>
    %25 = vector.shape_cast %24 : vector<8x32xf32> to vector<1x8x32xf32>
    %26 = arith.truncf %25 : vector<1x8x32xf32> to vector<1x8x32xbf16>
    %27 = vector.extract_strided_slice %20 {offsets = [0, 64], sizes = [8, 32], strides = [1, 1]} : vector<8x96xf32> to vector<8x32xf32>
    %28 = vector.shape_cast %27 : vector<8x32xf32> to vector<1x8x32xf32>
    %29 = arith.truncf %28 : vector<1x8x32xf32> to vector<1x8x32xbf16>
    %c0_9 = arith.constant 0 : index
    %c0_10 = arith.constant 0 : index
    %30 = vector.load %arg3[%c0_9, %c0_10] : memref<8x8xf32, #tpu.memory_space<vmem>>, vector<8x8xf32>
    %31 = vector.extract_strided_slice %23 {offsets = [0, 0, 0], sizes = [1, 8, 8], strides = [1, 1, 1]} : vector<1x8x32xbf16> to vector<1x8x8xbf16>
    %32 = vector.extract_strided_slice %26 {offsets = [0, 0, 0], sizes = [1, 8, 8], strides = [1, 1, 1]} : vector<1x8x32xbf16> to vector<1x8x8xbf16>
    "tpu.trace_start"() <{level = 10 : i32, message = "bqd,bkd->bqk"}> : () -> ()
    %cst_11 = arith.constant dense<0.000000e+00> : vector<1x8x8xf32>
    %33 = tpu.matmul %31, %32, %cst_11 {dimension_numbers = #tpu.dot_dimension_numbers<[2], [2], [1], [1], [0, 0, 0, 1, 1, 1], [0], [0]>} : vector<1x8x8xbf16>, vector<1x8x8xbf16>, vector<1x8x8xf32> -> vector<1x8x8xf32>
    "tpu.trace_stop"() : () -> ()
    %34 = vector.shape_cast %30 : vector<8x8xf32> to vector<1x8x8xf32>
    %35 = arith.addf %33, %34 : vector<1x8x8xf32>
    %cst_12 = arith.constant dense<0xFF800000> : vector<1x8xf32>
    %36 = vector.multi_reduction <maximumf>, %35, %cst_12 [2] : vector<1x8x8xf32> to vector<1x8xf32>
    %37 = vector.shape_cast %36 : vector<1x8xf32> to vector<1x8x1xf32>
    %38 = vector.broadcast %37 : vector<1x8x1xf32> to vector<1x8x8xf32>
    %39 = arith.subf %35, %38 : vector<1x8x8xf32>
    %40 = math.exp %39 : vector<1x8x8xf32>
    %cst_13 = arith.constant dense<0.000000e+00> : vector<1x8xf32>
    %41 = vector.multi_reduction <add>, %40, %cst_13 [2] : vector<1x8x8xf32> to vector<1x8xf32>
    %42 = vector.shape_cast %41 : vector<1x8xf32> to vector<1x8x1xf32>
    %43 = tpu.reciprocal %42 : vector<1x8x1xf32> -> vector<1x8x1xf32>
    %44 = vector.broadcast %43 : vector<1x8x1xf32> to vector<1x8x8xf32>
    %45 = arith.mulf %40, %44 : vector<1x8x8xf32>
    %46 = arith.truncf %45 : vector<1x8x8xf32> to vector<1x8x8xbf16>
    %47 = vector.extract_strided_slice %29 {offsets = [0, 0, 0], sizes = [1, 8, 8], strides = [1, 1, 1]} : vector<1x8x32xbf16> to vector<1x8x8xbf16>
    "tpu.trace_start"() <{level = 10 : i32, message = "bqk,bkd->bqd"}> : () -> ()
    %cst_14 = arith.constant dense<0.000000e+00> : vector<1x8x8xf32>
    %48 = tpu.matmul %46, %47, %cst_14 {dimension_numbers = #tpu.dot_dimension_numbers<[2], [1], [1], [2], [0, 0, 0, 1, 1, 2], [0], [0]>} : vector<1x8x8xbf16>, vector<1x8x8xbf16>, vector<1x8x8xf32> -> vector<1x8x8xf32>
    "tpu.trace_stop"() : () -> ()
    %49 = vector.extract_strided_slice %23 {offsets = [0, 0, 8], sizes = [1, 8, 8], strides = [1, 1, 1]} : vector<1x8x32xbf16> to vector<1x8x8xbf16>
    %50 = vector.extract_strided_slice %26 {offsets = [0, 0, 8], sizes = [1, 8, 8], strides = [1, 1, 1]} : vector<1x8x32xbf16> to vector<1x8x8xbf16>
    "tpu.trace_start"() <{level = 10 : i32, message = "bqd,bkd->bqk"}> : () -> ()
    %cst_15 = arith.constant dense<0.000000e+00> : vector<1x8x8xf32>
    %51 = tpu.matmul %49, %50, %cst_15 {dimension_numbers = #tpu.dot_dimension_numbers<[2], [2], [1], [1], [0, 0, 0, 1, 1, 1], [0], [0]>} : vector<1x8x8xbf16>, vector<1x8x8xbf16>, vector<1x8x8xf32> -> vector<1x8x8xf32>
    "tpu.trace_stop"() : () -> ()
    %52 = vector.shape_cast %30 : vector<8x8xf32> to vector<1x8x8xf32>
    %53 = arith.addf %51, %52 : vector<1x8x8xf32>
    %cst_16 = arith.constant dense<0xFF800000> : vector<1x8xf32>
    %54 = vector.multi_reduction <maximumf>, %53, %cst_16 [2] : vector<1x8x8xf32> to vector<1x8xf32>
    %55 = vector.shape_cast %54 : vector<1x8xf32> to vector<1x8x1xf32>
    %56 = vector.broadcast %55 : vector<1x8x1xf32> to vector<1x8x8xf32>
    %57 = arith.subf %53, %56 : vector<1x8x8xf32>
    %58 = math.exp %57 : vector<1x8x8xf32>
    %cst_17 = arith.constant dense<0.000000e+00> : vector<1x8xf32>
    %59 = vector.multi_reduction <add>, %58, %cst_17 [2] : vector<1x8x8xf32> to vector<1x8xf32>
    %60 = vector.shape_cast %59 : vector<1x8xf32> to vector<1x8x1xf32>
    %61 = tpu.reciprocal %60 : vector<1x8x1xf32> -> vector<1x8x1xf32>
    %62 = vector.broadcast %61 : vector<1x8x1xf32> to vector<1x8x8xf32>
    %63 = arith.mulf %58, %62 : vector<1x8x8xf32>
    %64 = arith.truncf %63 : vector<1x8x8xf32> to vector<1x8x8xbf16>
    %65 = vector.extract_strided_slice %29 {offsets = [0, 0, 8], sizes = [1, 8, 8], strides = [1, 1, 1]} : vector<1x8x32xbf16> to vector<1x8x8xbf16>
    "tpu.trace_start"() <{level = 10 : i32, message = "bqk,bkd->bqd"}> : () -> ()
    %cst_18 = arith.constant dense<0.000000e+00> : vector<1x8x8xf32>
    %66 = tpu.matmul %64, %65, %cst_18 {dimension_numbers = #tpu.dot_dimension_numbers<[2], [1], [1], [2], [0, 0, 0, 1, 1, 2], [0], [0]>} : vector<1x8x8xbf16>, vector<1x8x8xbf16>, vector<1x8x8xf32> -> vector<1x8x8xf32>
    "tpu.trace_stop"() : () -> ()
    %67 = vector.extract_strided_slice %23 {offsets = [0, 0, 16], sizes = [1, 8, 8], strides = [1, 1, 1]} : vector<1x8x32xbf16> to vector<1x8x8xbf16>
    %68 = vector.extract_strided_slice %26 {offsets = [0, 0, 16], sizes = [1, 8, 8], strides = [1, 1, 1]} : vector<1x8x32xbf16> to vector<1x8x8xbf16>
    "tpu.trace_start"() <{level = 10 : i32, message = "bqd,bkd->bqk"}> : () -> ()
    %cst_19 = arith.constant dense<0.000000e+00> : vector<1x8x8xf32>
    %69 = tpu.matmul %67, %68, %cst_19 {dimension_numbers = #tpu.dot_dimension_numbers<[2], [2], [1], [1], [0, 0, 0, 1, 1, 1], [0], [0]>} : vector<1x8x8xbf16>, vector<1x8x8xbf16>, vector<1x8x8xf32> -> vector<1x8x8xf32>
    "tpu.trace_stop"() : () -> ()
    %70 = vector.shape_cast %30 : vector<8x8xf32> to vector<1x8x8xf32>
    %71 = arith.addf %69, %70 : vector<1x8x8xf32>
    %cst_20 = arith.constant dense<0xFF800000> : vector<1x8xf32>
    %72 = vector.multi_reduction <maximumf>, %71, %cst_20 [2] : vector<1x8x8xf32> to vector<1x8xf32>
    %73 = vector.shape_cast %72 : vector<1x8xf32> to vector<1x8x1xf32>
    %74 = vector.broadcast %73 : vector<1x8x1xf32> to vector<1x8x8xf32>
    %75 = arith.subf %71, %74 : vector<1x8x8xf32>
    %76 = math.exp %75 : vector<1x8x8xf32>
    %cst_21 = arith.constant dense<0.000000e+00> : vector<1x8xf32>
    %77 = vector.multi_reduction <add>, %76, %cst_21 [2] : vector<1x8x8xf32> to vector<1x8xf32>
    %78 = vector.shape_cast %77 : vector<1x8xf32> to vector<1x8x1xf32>
    %79 = tpu.reciprocal %78 : vector<1x8x1xf32> -> vector<1x8x1xf32>
    %80 = vector.broadcast %79 : vector<1x8x1xf32> to vector<1x8x8xf32>
    %81 = arith.mulf %76, %80 : vector<1x8x8xf32>
    %82 = arith.truncf %81 : vector<1x8x8xf32> to vector<1x8x8xbf16>
    %83 = vector.extract_strided_slice %29 {offsets = [0, 0, 16], sizes = [1, 8, 8], strides = [1, 1, 1]} : vector<1x8x32xbf16> to vector<1x8x8xbf16>
    "tpu.trace_start"() <{level = 10 : i32, message = "bqk,bkd->bqd"}> : () -> ()
    %cst_22 = arith.constant dense<0.000000e+00> : vector<1x8x8xf32>
    %84 = tpu.matmul %82, %83, %cst_22 {dimension_numbers = #tpu.dot_dimension_numbers<[2], [1], [1], [2], [0, 0, 0, 1, 1, 2], [0], [0]>} : vector<1x8x8xbf16>, vector<1x8x8xbf16>, vector<1x8x8xf32> -> vector<1x8x8xf32>
    "tpu.trace_stop"() : () -> ()
    %85 = vector.extract_strided_slice %23 {offsets = [0, 0, 24], sizes = [1, 8, 8], strides = [1, 1, 1]} : vector<1x8x32xbf16> to vector<1x8x8xbf16>
    %86 = vector.extract_strided_slice %26 {offsets = [0, 0, 24], sizes = [1, 8, 8], strides = [1, 1, 1]} : vector<1x8x32xbf16> to vector<1x8x8xbf16>
    "tpu.trace_start"() <{level = 10 : i32, message = "bqd,bkd->bqk"}> : () -> ()
    %cst_23 = arith.constant dense<0.000000e+00> : vector<1x8x8xf32>
    %87 = tpu.matmul %85, %86, %cst_23 {dimension_numbers = #tpu.dot_dimension_numbers<[2], [2], [1], [1], [0, 0, 0, 1, 1, 1], [0], [0]>} : vector<1x8x8xbf16>, vector<1x8x8xbf16>, vector<1x8x8xf32> -> vector<1x8x8xf32>
    "tpu.trace_stop"() : () -> ()
    %88 = vector.shape_cast %30 : vector<8x8xf32> to vector<1x8x8xf32>
    %89 = arith.addf %87, %88 : vector<1x8x8xf32>
    %cst_24 = arith.constant dense<0xFF800000> : vector<1x8xf32>
    %90 = vector.multi_reduction <maximumf>, %89, %cst_24 [2] : vector<1x8x8xf32> to vector<1x8xf32>
    %91 = vector.shape_cast %90 : vector<1x8xf32> to vector<1x8x1xf32>
    %92 = vector.broadcast %91 : vector<1x8x1xf32> to vector<1x8x8xf32>
    %93 = arith.subf %89, %92 : vector<1x8x8xf32>
    %94 = math.exp %93 : vector<1x8x8xf32>
    %cst_25 = arith.constant dense<0.000000e+00> : vector<1x8xf32>
    %95 = vector.multi_reduction <add>, %94, %cst_25 [2] : vector<1x8x8xf32> to vector<1x8xf32>
    %96 = vector.shape_cast %95 : vector<1x8xf32> to vector<1x8x1xf32>
    %97 = tpu.reciprocal %96 : vector<1x8x1xf32> -> vector<1x8x1xf32>
    %98 = vector.broadcast %97 : vector<1x8x1xf32> to vector<1x8x8xf32>
    %99 = arith.mulf %94, %98 : vector<1x8x8xf32>
    %100 = arith.truncf %99 : vector<1x8x8xf32> to vector<1x8x8xbf16>
    %101 = vector.extract_strided_slice %29 {offsets = [0, 0, 24], sizes = [1, 8, 8], strides = [1, 1, 1]} : vector<1x8x32xbf16> to vector<1x8x8xbf16>
    "tpu.trace_start"() <{level = 10 : i32, message = "bqk,bkd->bqd"}> : () -> ()
    %cst_26 = arith.constant dense<0.000000e+00> : vector<1x8x8xf32>
    %102 = tpu.matmul %100, %101, %cst_26 {dimension_numbers = #tpu.dot_dimension_numbers<[2], [1], [1], [2], [0, 0, 0, 1, 1, 2], [0], [0]>} : vector<1x8x8xbf16>, vector<1x8x8xbf16>, vector<1x8x8xf32> -> vector<1x8x8xf32>
    "tpu.trace_stop"() : () -> ()
    %103 = tpu.concatenate %48, %66, %84, %102 in 2 : vector<1x8x8xf32>, vector<1x8x8xf32>, vector<1x8x8xf32>, vector<1x8x8xf32> -> vector<1x8x32xf32>
    %104 = vector.shape_cast %103 : vector<1x8x32xf32> to vector<8x32xf32>
    %105 = arith.truncf %104 : vector<8x32xf32> to vector<8x32xbf16>
    %c0_27 = arith.constant 0 : index
    %c0_28 = arith.constant 0 : index
    %c0_29 = arith.constant 0 : index
    %106 = vector.load %arg5[%c0_27, %c0_28, %c0_29] : memref<1x32x32xbf16, #tpu.memory_space<vmem>>, vector<1x32x32xbf16>
    %107 = vector.shape_cast %106 : vector<1x32x32xbf16> to vector<32x32xbf16>
    %cst_30 = arith.constant dense<0.000000e+00> : vector<8x32xf32>
    %108 = tpu.matmul %105, %107, %cst_30 {dimension_numbers = #tpu.dot_dimension_numbers<[1], [0], [0], [1], [0, 0, 1, 1], [], []>} : vector<8x32xbf16>, vector<32x32xbf16>, vector<8x32xf32> -> vector<8x32xf32>
    %109 = vector.broadcast %6 : vector<1x32xf32> to vector<8x32xf32>
    %110 = arith.addf %108, %109 : vector<8x32xf32>
    %111 = arith.addf %14, %110 : vector<8x32xf32>
    %cst_31 = arith.constant dense<0.000000e+00> : vector<8xf32>
    %112 = vector.multi_reduction <add>, %111, %cst_31 [1] : vector<8x32xf32> to vector<8xf32>
    %113 = vector.shape_cast %112 : vector<8xf32> to vector<8x1xf32>
    %cst_32 = arith.constant 3.200000e+01 : f32
    %114 = vector.broadcast %cst_32 : f32 to vector<8x1xf32>
    %115 = arith.divf %113, %114 : vector<8x1xf32>
    %116 = vector.broadcast %115 : vector<8x1xf32> to vector<8x32xf32>
    %117 = arith.subf %111, %116 : vector<8x32xf32>
    %118 = arith.mulf %117, %117 : vector<8x32xf32>
    %cst_33 = arith.constant dense<0.000000e+00> : vector<8xf32>
    %119 = vector.multi_reduction <add>, %118, %cst_33 [1] : vector<8x32xf32> to vector<8xf32>
    %120 = vector.shape_cast %119 : vector<8xf32> to vector<8x1xf32>
    %cst_34 = arith.constant 3.200000e+01 : f32
    %121 = vector.broadcast %cst_34 : f32 to vector<8x1xf32>
    %122 = arith.divf %120, %121 : vector<8x1xf32>
    %123 = vector.broadcast %115 : vector<8x1xf32> to vector<8x32xf32>
    %124 = arith.subf %111, %123 : vector<8x32xf32>
    %cst_35 = arith.constant 9.99999974E-6 : f32
    %125 = vector.broadcast %cst_35 : f32 to vector<8x1xf32>
    %126 = arith.addf %122, %125 : vector<8x1xf32>
    %127 = math.rsqrt %126 : vector<8x1xf32>
    %128 = vector.broadcast %127 : vector<8x1xf32> to vector<8x32xf32>
    %129 = arith.mulf %124, %128 : vector<8x32xf32>
    %130 = vector.broadcast %7 : vector<1x32xf32> to vector<8x32xf32>
    %131 = arith.mulf %129, %130 : vector<8x32xf32>
    %132 = vector.broadcast %8 : vector<1x32xf32> to vector<8x32xf32>
    %133 = arith.addf %131, %132 : vector<8x32xf32>
    %134 = arith.truncf %133 : vector<8x32xf32> to vector<8x32xbf16>
    %c0_36 = arith.constant 0 : index
    %c0_37 = arith.constant 0 : index
    %c0_38 = arith.constant 0 : index
    %135 = vector.load %arg6[%c0_36, %c0_37, %c0_38] : memref<1x32x64xbf16, #tpu.memory_space<vmem>>, vector<1x32x64xbf16>
    %136 = vector.shape_cast %135 : vector<1x32x64xbf16> to vector<32x64xbf16>
    %cst_39 = arith.constant dense<0.000000e+00> : vector<8x64xf32>
    %137 = tpu.matmul %134, %136, %cst_39 {dimension_numbers = #tpu.dot_dimension_numbers<[1], [0], [0], [1], [0, 0, 1, 1], [], []>} : vector<8x32xbf16>, vector<32x64xbf16>, vector<8x64xf32> -> vector<8x64xf32>
    %138 = vector.broadcast %9 : vector<1x64xf32> to vector<8x64xf32>
    %139 = arith.addf %137, %138 : vector<8x64xf32>
    %cst_40 = arith.constant 0.000000e+00 : f32
    %140 = vector.broadcast %cst_40 : f32 to vector<8x64xf32>
    %141 = arith.maximumf %139, %140 : vector<8x64xf32>
    %142 = arith.truncf %141 : vector<8x64xf32> to vector<8x64xbf16>
    %c0_41 = arith.constant 0 : index
    %c0_42 = arith.constant 0 : index
    %c0_43 = arith.constant 0 : index
    %143 = vector.load %arg7[%c0_41, %c0_42, %c0_43] : memref<1x64x32xbf16, #tpu.memory_space<vmem>>, vector<1x64x32xbf16>
    %144 = vector.shape_cast %143 : vector<1x64x32xbf16> to vector<64x32xbf16>
    %cst_44 = arith.constant dense<0.000000e+00> : vector<8x32xf32>
    %145 = tpu.matmul %142, %144, %cst_44 {dimension_numbers = #tpu.dot_dimension_numbers<[1], [0], [0], [1], [0, 0, 1, 1], [], []>} : vector<8x64xbf16>, vector<64x32xbf16>, vector<8x32xf32> -> vector<8x32xf32>
    %146 = vector.broadcast %10 : vector<1x32xf32> to vector<8x32xf32>
    %147 = arith.addf %145, %146 : vector<8x32xf32>
    %148 = arith.addf %133, %147 : vector<8x32xf32>
    %cst_45 = arith.constant dense<0.000000e+00> : vector<8xf32>
    %149 = vector.multi_reduction <add>, %148, %cst_45 [1] : vector<8x32xf32> to vector<8xf32>
    %150 = vector.shape_cast %149 : vector<8xf32> to vector<8x1xf32>
    %cst_46 = arith.constant 3.200000e+01 : f32
    %151 = vector.broadcast %cst_46 : f32 to vector<8x1xf32>
    %152 = arith.divf %150, %151 : vector<8x1xf32>
    %153 = vector.broadcast %152 : vector<8x1xf32> to vector<8x32xf32>
    %154 = arith.subf %148, %153 : vector<8x32xf32>
    %155 = arith.mulf %154, %154 : vector<8x32xf32>
    %cst_47 = arith.constant dense<0.000000e+00> : vector<8xf32>
    %156 = vector.multi_reduction <add>, %155, %cst_47 [1] : vector<8x32xf32> to vector<8xf32>
    %157 = vector.shape_cast %156 : vector<8xf32> to vector<8x1xf32>
    %cst_48 = arith.constant 3.200000e+01 : f32
    %158 = vector.broadcast %cst_48 : f32 to vector<8x1xf32>
    %159 = arith.divf %157, %158 : vector<8x1xf32>
    %160 = vector.broadcast %152 : vector<8x1xf32> to vector<8x32xf32>
    %161 = arith.subf %148, %160 : vector<8x32xf32>
    %cst_49 = arith.constant 9.99999974E-6 : f32
    %162 = vector.broadcast %cst_49 : f32 to vector<8x1xf32>
    %163 = arith.addf %159, %162 : vector<8x1xf32>
    %164 = math.rsqrt %163 : vector<8x1xf32>
    %165 = vector.broadcast %164 : vector<8x1xf32> to vector<8x32xf32>
    %166 = arith.mulf %161, %165 : vector<8x32xf32>
    %167 = vector.broadcast %11 : vector<1x32xf32> to vector<8x32xf32>
    %168 = arith.mulf %166, %167 : vector<8x32xf32>
    %169 = vector.broadcast %12 : vector<1x32xf32> to vector<8x32xf32>
    %170 = arith.addf %168, %169 : vector<8x32xf32>
    %171 = vector.shape_cast %170 : vector<8x32xf32> to vector<1x8x32xf32>
    %c0_50 = arith.constant 0 : index
    %c0_51 = arith.constant 0 : index
    %c0_52 = arith.constant 0 : index
    %172 = vector.load %arg9[%c0_50, %c0_51, %c0_52] : memref<1x8x32xf32, #tpu.memory_space<vmem>>, vector<1x8x32xf32>
    tpu.vector_store %arg9[%c0_50, %c0_51, %c0_52], %171 {strides = array<i32>} : memref<1x8x32xf32, #tpu.memory_space<vmem>>, vector<1x8x32xf32>,
    return
  }
  func.func @transform_0(%arg0: i32, %arg1: i32) -> (i32, i32, i32) {
    %c0_i32 = arith.constant 0 : i32
    %c0_i32_0 = arith.constant 0 : i32
    %c0_i32_1 = arith.constant 0 : i32
    return %arg0, %c0_i32, %c0_i32_0 : i32, i32, i32
  }
  func.func @transform_1(%arg0: i32, %arg1: i32) -> (i32, i32) {
    %c0_i32 = arith.constant 0 : i32
    %c0_i32_0 = arith.constant 0 : i32
    %c0_i32_1 = arith.constant 0 : i32
    return %c0_i32, %c0_i32_0 : i32, i32
  }
  func.func @transform_2(%arg0: i32, %arg1: i32) -> (i32, i32, i32) {
    %c0_i32 = arith.constant 0 : i32
    %c0_i32_0 = arith.constant 0 : i32
    %c0_i32_1 = arith.constant 0 : i32
    return %arg1, %c0_i32, %c0_i32_0 : i32, i32, i32
  }
  func.func @transform_3(%arg0: i32, %arg1: i32) -> (i32, i32, i32) {
    %c0_i32 = arith.constant 0 : i32
    %c0_i32_0 = arith.constant 0 : i32
    %c0_i32_1 = arith.constant 0 : i32
    return %arg1, %c0_i32, %c0_i32_0 : i32, i32, i32
  }
  func.func @transform_4(%arg0: i32, %arg1: i32) -> (i32, i32, i32) {
    %c0_i32 = arith.constant 0 : i32
    %c0_i32_0 = arith.constant 0 : i32
    %c0_i32_1 = arith.constant 0 : i32
    return %arg1, %c0_i32, %c0_i32_0 : i32, i32, i32
  }
  func.func @transform_5(%arg0: i32, %arg1: i32) -> (i32, i32, i32) {
    %c0_i32 = arith.constant 0 : i32
    %c0_i32_0 = arith.constant 0 : i32
    %c0_i32_1 = arith.constant 0 : i32
    return %arg1, %c0_i32, %c0_i32_0 : i32, i32, i32
  }
  func.func @transform_6(%arg0: i32, %arg1: i32) -> (i32, i32, i32) {
    %c0_i32 = arith.constant 0 : i32
    %c0_i32_0 = arith.constant 0 : i32
    %c0_i32_1 = arith.constant 0 : i32
    return %arg1, %c0_i32, %c0_i32_0 : i32, i32, i32
  }
  func.func @transform_7(%arg0: i32, %arg1: i32) -> (i32, i32, i32) {
    %c0_i32 = arith.constant 0 : i32
    %c0_i32_0 = arith.constant 0 : i32
    %c0_i32_1 = arith.constant 0 : i32
    return %arg0, %c0_i32, %c0_i32_0 : i32, i32, i32
  }
}

</mosaic_0001>

<llo_original>
// kernel: tpu_custom_call.1
$region0: #{tpu_custom_call.1}
  #allocation0 [shape = 'u32[]', space=smem, size = 0x4, offset = 0x4, fixed_abs, tag = 'smem constant byte address 0x4 - core index']
  #allocation1 [shape = 'u32[144,128]{1,0:T(1,128)}', space=vmem, size = 0x12000, scoped, tag = 'internal scratch']
  %s0 = inlined_call_operand.hbm [shape: f32[2,8,32], index: 0, kind: input, shape index: {}]
  %s1 = inlined_call_operand.hbm [shape: f32[8,8], index: 1, kind: input, shape index: {}]
  %s2 = inlined_call_operand.vmem [shape: bf16[2,32,96], index: 2, kind: input, shape index: {}]
  %s3 = inlined_call_operand.vmem [shape: bf16[2,32,32], index: 3, kind: input, shape index: {}]
  %s4 = inlined_call_operand.vmem [shape: bf16[2,32,64], index: 4, kind: input, shape index: {}]
  %s5 = inlined_call_operand.vmem [shape: bf16[2,64,32], index: 5, kind: input, shape index: {}]
  %s6 = inlined_call_operand.vmem [shape: f32[2,8,96], index: 6, kind: input, shape index: {}]
  %s7 = inlined_call_operand.hbm [shape: f32[2,8,32], index: 7, kind: output, shape index: {}]
  %s8 = sld [smem:[#allocation0]]
  $region73: #{tpu_custom_call.1} parent=0
    _
  %s10 = ssub.s32 1, %s8
  %s11 = scalar_select 0, %s10, %s8
  $region1: #{tpu_custom_call.1} parent=0
    #allocation2 [shape = 'u8[8192]{0}', space=vmem, size = 0x2000, scoped, tag = 'input window, operand 0']
    #allocation3 [shape = 's32[2]{0}', space=sflag, size = 0x8, scoped, tag = 'scoped memory for tpu_custom_call.1']
    #allocation4 [shape = 's32[2]{0}', space=sflag, size = 0x8, scoped, tag = 'scoped memory for tpu_custom_call.1']
    #allocation5 [shape = 'u8[4096]{0}', space=vmem, size = 0x1000, scoped, tag = 'input window, operand 1, single buffered']
    #allocation6 [shape = 's32[1]{0}', space=sflag, size = 0x4, scoped, tag = 'scoped memory for tpu_custom_call.1']
    #allocation7 [shape = 'u8[8192]{0}', space=vmem, size = 0x2000, scoped, tag = 'output window, operand 0']
    %12 = vsyncpa [#allocation3], 0
    %s13 = scalar_lea.sflag [#allocation3], 1
    %14 = vsyncpa %s13, 0
    %15 = vsyncpa [#allocation6], 0
    %16 = vsyncpa [#allocation4], 0
    %s17 = scalar_lea.sflag [#allocation4], 1
    %18 = vsyncpa %s17, 0
    loop: start=0, step=1, limit=6
    $region2: #{tpu_custom_call.1} parent=1 // loop_pre_header
      _
    $region3: #{tpu_custom_call.1} parent=1 // loop_header
      %s20 = sphi 0, %s24
      %p21 = scmp.ge.s32.totalorder %s20, 6
      %s27 = sphi 0, %s39
      %s28 = sphi 0, %s35
      %s29 = sphi 0, %s27
      %s30 = sphi 0, %s28
      %s31 = sphi 0, %s29
      %s32 = sphi 0, %s30
      %s42 = sphi 0, %s44
      %s45 = sphi 0, %s42
      %s46 = sphi 0, %s45
      %s62 = sphi 0, %s46
      %s66 = sphi 0, %s66
      %s68 = sphi 0, %s66
      %s69 = sphi 0, %s68
      %s83 = sphi 0, %s69
      %s89 = sphi 0, %s91
      %s92 = sphi 0, %s89
      %s93 = sphi 0, %s92
      %s109 = sphi 0, %s93
      %s115 = sphi 0, %s117
      %s118 = sphi 0, %s115
      %s119 = sphi 0, %s118
      %s135 = sphi 0, %s119
      %s141 = sphi 0, %s143
      %s144 = sphi 0, %s141
      %s145 = sphi 0, %s144
      %s161 = sphi 0, %s145
      %s167 = sphi 0, %s169
      %s170 = sphi 0, %s167
      %s171 = sphi 0, %s170
      %s187 = sphi 0, %s171
      %s193 = sphi 0, %s195
      %s196 = sphi 0, %s193
      %s197 = sphi 0, %s196
      %s213 = sphi 0, %s197
      %s219 = sphi 0, %s221
      %s222 = sphi 0, %s219
      %s223 = sphi 0, %s222
      %s239 = sphi 0, %s223
    $region4: #{tpu_custom_call.1} parent=1 // loop_header_branch
      %23 = sbr.rel (%p21) target = $region8
    $region5: #{tpu_custom_call.1} parent=1 // loop_body
      %s25 = ssub.s32 %s20, 1
      %s26 = ssub.s32 %s20, 2
      %s33 = sadd.s32 1, %s28
      %p34 = scmp.ge.s32.totalorder %s33, 2
      %s35 = scalar_select %p34, 0, %s33
      %s36 = sadd.s32 1, %s27
      %s37 = scalar_select %p34, %s36, %s27
      %p38 = scmp.ge.s32.totalorder %s37, 2
      %s39 = scalar_select %p38, 0, %s37
      %s40 = ssub.s32 %s27, %s39
      %p41 = scmp.eq.s32.totalorder %s40, 0
      %s43 = sadd.s32 %s42, 1
      %s44 = scalar_select %p41, %s42, %s43
      %p47 = pneg %p41
      %p48 = scmp.eq.s32.totalorder %s20, 3
      %p49 = por %p47, %p48
      %p50 = scmp.ne.s32.totalorder %s42, %s45
      %p51 = scmp.eq.s32.totalorder %s20, 0
      %p52 = por %p50, %p51
      %p53 = scmp.ne.s32.totalorder %s42, %s45
      %p54 = scmp.eq.s32.totalorder %s25, 3
      %p55 = por %p53, %p54
      %p56 = scmp.ne.s32.totalorder %s45, %s46
      %p57 = scmp.eq.s32.totalorder %s25, 0
      %p58 = por %p56, %p57
      %p59 = scmp.ne.s32.totalorder %s45, %s46
      %p60 = scmp.eq.s32.totalorder %s26, 3
      %p61 = por %p59, %p60
      %p63 = scmp.ne.s32.totalorder %s46, %s62
      %p64 = scmp.eq.s32.totalorder %s26, 0
      %p65 = por %p63, %p64
      %s67 = sadd.s32 %s66, 1
      %p70 = scmp.eq.s32.totalorder %s20, 3
      %p71 = scmp.ne.s32.totalorder %s66, %s68
      %p72 = scmp.eq.s32.totalorder %s20, 0
      %p73 = por %p71, %p72
      %p74 = scmp.ne.s32.totalorder %s66, %s68
      %p75 = scmp.eq.s32.totalorder %s25, 3
      %p76 = por %p74, %p75
      %p77 = scmp.ne.s32.totalorder %s68, %s69
      %p78 = scmp.eq.s32.totalorder %s25, 0
      %p79 = por %p77, %p78
      %p80 = scmp.ne.s32.totalorder %s68, %s69
      %p81 = scmp.eq.s32.totalorder %s26, 3
      %p82 = por %p80, %p81
      %p84 = scmp.ne.s32.totalorder %s69, %s83
      %p85 = scmp.eq.s32.totalorder %s26, 0
      %p86 = por %p84, %p85
      %s87 = ssub.s32 %s28, %s35
      %p88 = scmp.eq.s32.totalorder %s87, 0
      %s90 = sadd.s32 %s89, 1
      %s91 = scalar_select %p88, %s89, %s90
      %p94 = pneg %p88
      %p95 = scmp.eq.s32.totalorder %s20, 3
      %p96 = por %p94, %p95
      %p97 = scmp.ne.s32.totalorder %s89, %s92
      %p98 = scmp.eq.s32.totalorder %s20, 0
      %p99 = por %p97, %p98
      %p100 = scmp.ne.s32.totalorder %s89, %s92
      %p101 = scmp.eq.s32.totalorder %s25, 3
      %p102 = por %p100, %p101
      %p103 = scmp.ne.s32.totalorder %s92, %s93
      %p104 = scmp.eq.s32.totalorder %s25, 0
      %p105 = por %p103, %p104
      %p106 = scmp.ne.s32.totalorder %s92, %s93
      %p107 = scmp.eq.s32.totalorder %s26, 3
      %p108 = por %p106, %p107
      %p110 = scmp.ne.s32.totalorder %s93, %s109
      %p111 = scmp.eq.s32.totalorder %s26, 0
      %p112 = por %p110, %p111
      %s113 = ssub.s32 %s28, %s35
      %p114 = scmp.eq.s32.totalorder %s113, 0
      %s116 = sadd.s32 %s115, 1
      %s117 = scalar_select %p114, %s115, %s116
      %p120 = pneg %p114
      %p121 = scmp.eq.s32.totalorder %s20, 3
      %p122 = por %p120, %p121
      %p123 = scmp.ne.s32.totalorder %s115, %s118
      %p124 = scmp.eq.s32.totalorder %s20, 0
      %p125 = por %p123, %p124
      %p126 = scmp.ne.s32.totalorder %s115, %s118
      %p127 = scmp.eq.s32.totalorder %s25, 3
      %p128 = por %p126, %p127
      %p129 = scmp.ne.s32.totalorder %s118, %s119
      %p130 = scmp.eq.s32.totalorder %s25, 0
      %p131 = por %p129, %p130
      %p132 = scmp.ne.s32.totalorder %s118, %s119
      %p133 = scmp.eq.s32.totalorder %s26, 3
      %p134 = por %p132, %p133
      %p136 = scmp.ne.s32.totalorder %s119, %s135
      %p137 = scmp.eq.s32.totalorder %s26, 0
      %p138 = por %p136, %p137
      %s139 = ssub.s32 %s28, %s35
      %p140 = scmp.eq.s32.totalorder %s139, 0
      %s142 = sadd.s32 %s141, 1
      %s143 = scalar_select %p140, %s141, %s142
      %p146 = pneg %p140
      %p147 = scmp.eq.s32.totalorder %s20, 3
      %p148 = por %p146, %p147
      %p149 = scmp.ne.s32.totalorder %s141, %s144
      %p150 = scmp.eq.s32.totalorder %s20, 0
      %p151 = por %p149, %p150
      %p152 = scmp.ne.s32.totalorder %s141, %s144
      %p153 = scmp.eq.s32.totalorder %s25, 3
      %p154 = por %p152, %p153
      %p155 = scmp.ne.s32.totalorder %s144, %s145
      %p156 = scmp.eq.s32.totalorder %s25, 0
      %p157 = por %p155, %p156
      %p158 = scmp.ne.s32.totalorder %s144, %s145
      %p159 = scmp.eq.s32.totalorder %s26, 3
      %p160 = por %p158, %p159
      %p162 = scmp.ne.s32.totalorder %s145, %s161
      %p163 = scmp.eq.s32.totalorder %s26, 0
      %p164 = por %p162, %p163
      %s165 = ssub.s32 %s28, %s35
      %p166 = scmp.eq.s32.totalorder %s165, 0
      %s168 = sadd.s32 %s167, 1
      %s169 = scalar_select %p166, %s167, %s168
      %p172 = pneg %p166
      %p173 = scmp.eq.s32.totalorder %s20, 3
      %p174 = por %p172, %p173
      %p175 = scmp.ne.s32.totalorder %s167, %s170
      %p176 = scmp.eq.s32.totalorder %s20, 0
      %p177 = por %p175, %p176
      %p178 = scmp.ne.s32.totalorder %s167, %s170
      %p179 = scmp.eq.s32.totalorder %s25, 3
      %p180 = por %p178, %p179
      %p181 = scmp.ne.s32.totalorder %s170, %s171
      %p182 = scmp.eq.s32.totalorder %s25, 0
      %p183 = por %p181, %p182
      %p184 = scmp.ne.s32.totalorder %s170, %s171
      %p185 = scmp.eq.s32.totalorder %s26, 3
      %p186 = por %p184, %p185
      %p188 = scmp.ne.s32.totalorder %s171, %s187
      %p189 = scmp.eq.s32.totalorder %s26, 0
      %p190 = por %p188, %p189
      %s191 = ssub.s32 %s28, %s35
      %p192 = scmp.eq.s32.totalorder %s191, 0
      %s194 = sadd.s32 %s193, 1
      %s195 = scalar_select %p192, %s193, %s194
      %p198 = pneg %p192
      %p199 = scmp.eq.s32.totalorder %s20, 3
      %p200 = por %p198, %p199
      %p201 = scmp.ne.s32.totalorder %s193, %s196
      %p202 = scmp.eq.s32.totalorder %s20, 0
      %p203 = por %p201, %p202
      %p204 = scmp.ne.s32.totalorder %s193, %s196
      %p205 = scmp.eq.s32.totalorder %s25, 3
      %p206 = por %p204, %p205
      %p207 = scmp.ne.s32.totalorder %s196, %s197
      %p208 = scmp.eq.s32.totalorder %s25, 0
      %p209 = por %p207, %p208
      %p210 = scmp.ne.s32.totalorder %s196, %s197
      %p211 = scmp.eq.s32.totalorder %s26, 3
      %p212 = por %p210, %p211
      %p214 = scmp.ne.s32.totalorder %s197, %s213
      %p215 = scmp.eq.s32.totalorder %s26, 0
      %p216 = por %p214, %p215
      %s217 = ssub.s32 %s27, %s39
      %p218 = scmp.eq.s32.totalorder %s217, 0
      %s220 = sadd.s32 %s219, 1
      %s221 = scalar_select %p218, %s219, %s220
      %p224 = pneg %p218
      %p225 = scmp.eq.s32.totalorder %s20, 3
      %p226 = por %p224, %p225
      %p227 = scmp.ne.s32.totalorder %s219, %s222
      %p228 = scmp.eq.s32.totalorder %s20, 0
      %p229 = por %p227, %p228
      %p230 = scmp.ne.s32.totalorder %s219, %s222
      %p231 = scmp.eq.s32.totalorder %s25, 3
      %p232 = por %p230, %p231
      %p233 = scmp.ne.s32.totalorder %s222, %s223
      %p234 = scmp.eq.s32.totalorder %s25, 0
      %p235 = por %p233, %p234
      %p236 = scmp.ne.s32.totalorder %s222, %s223
      %p237 = scmp.eq.s32.totalorder %s26, 3
      %p238 = por %p236, %p237
      %p240 = scmp.ne.s32.totalorder %s223, %s239
      %p241 = scmp.eq.s32.totalorder %s26, 0
      %p242 = por %p240, %p241
      %p243 = scmp.le.s32.totalorder 1, %s20
      %p244 = scmp.lt.s32.totalorder %s20, 5
      %p245 = pnand %p243, %p244
      %p246 = pneg %p245
      // Predicated region
      $region9: #{tpu_custom_call.1} parent=5 // pred_check
        _
      $region10: #{tpu_custom_call.1} parent=5 // pred_check_branch
        %248 = sbr.rel (%p245) target = $region12
      $region11: #{tpu_custom_call.1} parent=5 // pred_region
        %s249 = ssub.s32 %s20, 1
        // Predicated region
        $region13: #{tpu_custom_call.1} parent=11 // pred_check
          %p250 = pneg %p79
        $region14: #{tpu_custom_call.1} parent=11 // pred_check_branch
          %252 = sbr.rel (%p250) target = $region16
        $region15: #{tpu_custom_call.1} parent=11 // pred_region
          %s254 = ssub.s32 128, 128
          %255 = vsyncadd [#allocation6], %s254
          %s257 = sshll.u32 [#allocation5], 4
          %s258 = int_to_ptr.vmem [resolvable:$true] %s257
          %260 = dma.hbm_to_vmem [thread:$0]  %s1, 128, %s258, [#allocation6]
        $region16: #{tpu_custom_call.1} parent=11 // pred_fallthru
          _
      $region12: #{tpu_custom_call.1} parent=5 // pred_fallthru
        _
      %p261 = scmp.lt.s32.totalorder %s20, 4
      // Predicated region
      $region17: #{tpu_custom_call.1} parent=5 // pred_check
        %p262 = pneg %p261
      $region18: #{tpu_custom_call.1} parent=5 // pred_check_branch
        %264 = sbr.rel (%p262) target = $region20
      $region19: #{tpu_custom_call.1} parent=5 // pred_region
        // Predicated region
        $region21: #{tpu_custom_call.1} parent=19 // pred_check
          %p265 = pneg %p52
        $region22: #{tpu_custom_call.1} parent=19 // pred_check_branch
          %267 = sbr.rel (%p265) target = $region24
        $region23: #{tpu_custom_call.1} parent=19 // pred_region
          %s268 = sand.u32 %s42, 1
          %s269 = scalar_lea.sflag [#allocation3], %s268
          %s270 = sand.u32 %s42, 1
          %s271 = smul.addr %s270, 8
          %s272 = scalar_lea.vmem [#allocation2], %s271
          %s274 = ssub.s32 128, 128
          %275 = vsyncadd %s269, %s274
          %s276 = smul.addr %s27, 128
          %s277 = scalar_lea.hbm %s0, %s276
          %s279 = sshll.u32 %s272, 4
          %s280 = int_to_ptr.vmem [resolvable:$true] %s279
          %282 = dma.hbm_to_vmem [thread:$0]  %s277, 128, %s280, %s269
        $region24: #{tpu_custom_call.1} parent=19 // pred_fallthru
          _
        // Predicated region
        $region25: #{tpu_custom_call.1} parent=19 // pred_check
          %p283 = pneg %p99
        $region26: #{tpu_custom_call.1} parent=19 // pred_check_branch
          %285 = sbr.rel (%p283) target = $region28
        $region27: #{tpu_custom_call.1} parent=19 // pred_region
          %p286 = scmp.lt.s32.totalorder %s28, 1
          %s287 = scalar_select %p286, %s28, 1
          %s288 = smul.addr %s287, 4
          %s289 = smul.addr %s288, 4
          %s290 = scalar_lea.vmem %s2, %s289
        $region28: #{tpu_custom_call.1} parent=19 // pred_fallthru
          _
        // Predicated region
        $region29: #{tpu_custom_call.1} parent=19 // pred_check
          %p291 = pneg %p125
        $region30: #{tpu_custom_call.1} parent=19 // pred_check_branch
          %293 = sbr.rel (%p291) target = $region32
        $region31: #{tpu_custom_call.1} parent=19 // pred_region
          %p294 = scmp.lt.s32.totalorder %s28, 1
          %s295 = scalar_select %p294, %s28, 1
          %s296 = smul.addr %s295, 4
          %s297 = smul.addr %s296, 4
          %s298 = scalar_lea.vmem %s3, %s297
        $region32: #{tpu_custom_call.1} parent=19 // pred_fallthru
          _
        // Predicated region
        $region33: #{tpu_custom_call.1} parent=19 // pred_check
          %p299 = pneg %p151
        $region34: #{tpu_custom_call.1} parent=19 // pred_check_branch
          %301 = sbr.rel (%p299) target = $region36
        $region35: #{tpu_custom_call.1} parent=19 // pred_region
          %p302 = scmp.lt.s32.totalorder %s28, 1
          %s303 = scalar_select %p302, %s28, 1
          %s304 = smul.addr %s303, 4
          %s305 = smul.addr %s304, 4
          %s306 = scalar_lea.vmem %s4, %s305
        $region36: #{tpu_custom_call.1} parent=19 // pred_fallthru
          _
        // Predicated region
        $region37: #{tpu_custom_call.1} parent=19 // pred_check
          %p307 = pneg %p177
        $region38: #{tpu_custom_call.1} parent=19 // pred_check_branch
          %309 = sbr.rel (%p307) target = $region40
        $region39: #{tpu_custom_call.1} parent=19 // pred_region
          %p310 = scmp.lt.s32.totalorder %s28, 1
          %s311 = scalar_select %p310, %s28, 1
          %s312 = smul.addr %s311, 8
          %s313 = smul.addr %s312, 4
          %s314 = scalar_lea.vmem %s5, %s313
        $region40: #{tpu_custom_call.1} parent=19 // pred_fallthru
          _
        // Predicated region
        $region41: #{tpu_custom_call.1} parent=19 // pred_check
          %p315 = pneg %p203
        $region42: #{tpu_custom_call.1} parent=19 // pred_check_branch
          %317 = sbr.rel (%p315) target = $region44
        $region43: #{tpu_custom_call.1} parent=19 // pred_region
          %p318 = scmp.lt.s32.totalorder %s28, 1
          %s319 = scalar_select %p318, %s28, 1
          %s320 = smul.addr %s319, 8
          %s321 = scalar_lea.vmem %s6, %s320
        $region44: #{tpu_custom_call.1} parent=19 // pred_fallthru
          _
      $region20: #{tpu_custom_call.1} parent=5 // pred_fallthru
        _
      %p322 = scmp.le.s32.totalorder 1, %s20
      %p323 = scmp.lt.s32.totalorder %s20, 5
      %p324 = pnand %p322, %p323
      %p325 = pneg %p324
      // Predicated region
      $region45: #{tpu_custom_call.1} parent=5 // pred_check
        _
      $region46: #{tpu_custom_call.1} parent=5 // pred_check_branch
        %327 = sbr.rel (%p324) target = $region48
      $region47: #{tpu_custom_call.1} parent=5 // pred_region
        %s328 = ssub.s32 %s20, 1
        %s329 = sand.u32 %s45, 1
        %s330 = scalar_lea.sflag [#allocation3], %s329
        %s331 = sand.u32 %s45, 1
        %s332 = smul.addr %s331, 8
        %s333 = scalar_lea.vmem [#allocation2], %s332
        // Predicated region
        $region49: #{tpu_custom_call.1} parent=47 // pred_check
          %p334 = pneg %p58
        $region50: #{tpu_custom_call.1} parent=47 // pred_check_branch
          %336 = sbr.rel (%p334) target = $region52
        $region51: #{tpu_custom_call.1} parent=47 // pred_region
          %337 = dma.done %s330, 128
        $region52: #{tpu_custom_call.1} parent=47 // pred_fallthru
          _
        // Predicated region
        $region53: #{tpu_custom_call.1} parent=47 // pred_check
          %p338 = pneg %p79
        $region54: #{tpu_custom_call.1} parent=47 // pred_check_branch
          %340 = sbr.rel (%p338) target = $region56
        $region55: #{tpu_custom_call.1} parent=47 // pred_region
          %341 = dma.done [#allocation6], 128
        $region56: #{tpu_custom_call.1} parent=47 // pred_fallthru
          _
        %s342 = sand.u32 %s45, 1
        %s343 = scalar_lea.sflag [#allocation3], %s342
        %s344 = sand.u32 %s45, 1
        %s345 = smul.addr %s344, 8
        %s346 = scalar_lea.vmem [#allocation2], %s345
        %p347 = pneg %p58
        %p348 = pneg %p55
        %p349 = pneg %p79
        %p350 = pneg %p76
        %p351 = scmp.lt.s32.totalorder %s30, 1
        %s352 = scalar_select %p351, %s30, 1
        %s353 = smul.addr %s352, 4
        %s354 = smul.addr %s353, 4
        %s355 = scalar_lea.vmem %s2, %s354
        %p356 = pneg %p105
        %p357 = pneg %p102
        %p358 = scmp.lt.s32.totalorder %s30, 1
        %s359 = scalar_select %p358, %s30, 1
        %s360 = smul.addr %s359, 4
        %s361 = smul.addr %s360, 4
        %s362 = scalar_lea.vmem %s3, %s361
        %p363 = pneg %p131
        %p364 = pneg %p128
        %p365 = scmp.lt.s32.totalorder %s30, 1
        %s366 = scalar_select %p365, %s30, 1
        %s367 = smul.addr %s366, 4
        %s368 = smul.addr %s367, 4
        %s369 = scalar_lea.vmem %s4, %s368
        %p370 = pneg %p157
        %p371 = pneg %p154
        %p372 = scmp.lt.s32.totalorder %s30, 1
        %s373 = scalar_select %p372, %s30, 1
        %s374 = smul.addr %s373, 8
        %s375 = smul.addr %s374, 4
        %s376 = scalar_lea.vmem %s5, %s375
        %p377 = pneg %p183
        %p378 = pneg %p180
        %p379 = scmp.lt.s32.totalorder %s30, 1
        %s380 = scalar_select %p379, %s30, 1
        %s381 = smul.addr %s380, 8
        %s382 = scalar_lea.vmem %s6, %s381
        %p383 = pneg %p209
        %p384 = pneg %p206
        %p385 = pneg %p235
        %p386 = pneg %p232
        %s387 = sand.u32 %s222, 1
        %s388 = scalar_lea.sflag [#allocation4], %s387
        %s389 = sand.u32 %s222, 1
        %s390 = smul.addr %s389, 8
        %s391 = scalar_lea.vmem [#allocation7], %s390
        %p392 = scmp.lt.s32.totalorder %s30, 1
        %s393 = scalar_select %p392, %s30, 1
        %s394 = smul.addr %s393, 4
        %s395 = smul.addr %s394, 4
        %s396 = scalar_lea.vmem %s2, %s395
        %p397 = scmp.lt.s32.totalorder %s30, 1
        %s398 = scalar_select %p397, %s30, 1
        %s399 = smul.addr %s398, 4
        %s400 = smul.addr %s399, 4
        %s401 = scalar_lea.vmem %s3, %s400
        %p402 = scmp.lt.s32.totalorder %s30, 1
        %s403 = scalar_select %p402, %s30, 1
        %s404 = smul.addr %s403, 4
        %s405 = smul.addr %s404, 4
        %s406 = scalar_lea.vmem %s4, %s405
        %p407 = scmp.lt.s32.totalorder %s30, 1
        %s408 = scalar_select %p407, %s30, 1
        %s409 = smul.addr %s408, 8
        %s410 = smul.addr %s409, 4
        %s411 = scalar_lea.vmem %s5, %s410
        %p412 = scmp.lt.s32.totalorder %s30, 1
        %s413 = scalar_select %p412, %s30, 1
        %s414 = smul.addr %s413, 8
        %s415 = scalar_lea.vmem %s6, %s414
        %p417 = scmp.eq.s32.totalorder %s30, 0
        // Predicated region
        $region57: #{tpu_custom_call.1} parent=47 // pred_check
          %p418 = pneg %p417
        $region58: #{tpu_custom_call.1} parent=47 // pred_check_branch
          %420 = sbr.rel (%p418) target = $region60
        $region59: #{tpu_custom_call.1} parent=47 // pred_region
          %v421 = vld [vmem:[%s333] sm:$0xff]
          %vm422 = vcmask 261120
          %423 = vst.msk [vmem:[%s391] sm:$0xff] %vm422, %v421
        $region60: #{tpu_custom_call.1} parent=47 // pred_fallthru
          _
        %v424 = vld [vmem:[%s415] sm:$0xff]
        %v425 = vld [vmem:[%s391] sm:$0xff]
        %v426 = vpack.c.bf16 %v425, %v425
        %v427 = vld [vmem:[%s396] sm:$0xf]
        %v428 = vld [vmem:[%s396 + $0x4] sm:$0xf]
        %v429 = vld [vmem:[%s396 + $0x8] sm:$0xf]
        %v430 = vld [vmem:[%s396 + $0xc] sm:$0xf]
        %v431 = vlaneseq
        %v432 = vshrl.u32 %v431, 7
        %v433 = vsub.s32 0, %v432
        %v434 = vrot.slane %v424, %v433
        %v439 = vunpack.c.l.b16 %v427
        %v440 = vunpack.c.l.b16 %v428
        %v441 = vunpack.c.l.b16 %v429
        %v442 = vunpack.c.l.b16 %v430
        %v443 = vpack.c.b16 %v440, %v439
        %v444 = vpack.c.b16 %v442, %v441
        %vm447 = vcmask 261120
        %v449 = vsel %vm447, %v426, 0
        %451 = vmatprep.subr.bf16.mxu0 0
        %452 = vmatpush1.bf16.msra.mxu0 %v443
        %453 = vmatprep.subr.bf16.mxu0 0
        %454 = vmatpush1.bf16.msra.mxu0 %v444
        %455 = vmatprep.subr.bf16.mxu0 0
        %456 = vmatpush1.bf16.msra.mxu0 0
        %457 = vmatprep.subr.bf16.mxu0 0
        %458 = vmatpush1.bf16.msra.mxu0 0
        %459 = vmatprep.subr.bf16.mxu0 0
        %460 = vmatpush1.bf16.msra.mxu0 0
        %461 = vmatprep.subr.bf16.mxu0 0
        %462 = vmatpush1.bf16.msra.mxu0 0
        %463 = vmatprep.subr.bf16.mxu0 0
        %464 = vmatpush1.bf16.msra.mxu0 0
        %465 = vmatprep.subr.bf16.mxu0 0
        %466 = vmatpush1.bf16.msra.mxu0 0
        %467 = vmatprep.subr.bf16.mxu0 0
        %468 = vmatpush1.bf16.msra.mxu0 0
        %469 = vmatprep.subr.bf16.mxu0 0
        %470 = vmatpush1.bf16.msra.mxu0 0
        %471 = vmatprep.subr.bf16.mxu0 0
        %472 = vmatpush1.bf16.msra.mxu0 0
        %473 = vmatprep.subr.bf16.mxu0 0
        %474 = vmatpush1.bf16.msra.mxu0 0
        %475 = vmatprep.subr.bf16.mxu0 0
        %476 = vmatpush1.bf16.msra.mxu0 0
        %477 = vmatprep.subr.bf16.mxu0 0
        %478 = vmatpush1.bf16.msra.mxu0 0
        %479 = vmatprep.subr.bf16.mxu0 0
        %480 = vmatpush1.bf16.msra.mxu0 0
        %481 = vmatprep.subr.bf16.mxu0 0
        %482 = vmatpush1.bf16.msra.mxu0 0
        %483 = vmatprep.mubr.bf16.mxu0 0
        %484 = vmatmul.mubr.bf16.gmra.mrb[0].mxu0 %v449
        %v485 = vpop.f32.mrb[0].mxu0
        %v486 = vadd.f32 %v434, %v485
        %v487 = vpop.f32.mrb[0].mxu0
        %v488 = vpop.f32.mrb[0].mxu0
        %v489 = vpop.f32.mrb[0].mxu0
        %490 = vdwg.mxu0
        %v491 = vpack.c.bf16 %v486, %v486
        %v492 = vld [vmem:[#allocation5] sm:$0xff]
        %494 = vrot.lane.b32.xlu0 %v491, 96
        %v495 = vpop.permute.xlu0 %494
        %vm496 = vcmask 64512
        %v498 = vsel %vm496, %v491, 0
        %v501 = vsel %vm496, %v495, 0
        %503 = vmatprep.subr.bf16.mxu0 0
        %504 = vmatpush1.bf16.xpose.msra.mxu0 %v501
        %505 = vmatprep.subr.bf16.mxu0 0
        %506 = vmatpush1.bf16.xpose.msra.mxu0 0
        %507 = vmatprep.subr.bf16.mxu0 0
        %508 = vmatpush1.bf16.xpose.msra.mxu0 0
        %509 = vmatprep.subr.bf16.mxu0 0
        %510 = vmatpush1.bf16.xpose.msra.mxu0 0
        %511 = vmatprep.subr.bf16.mxu0 0
        %512 = vmatpush1.bf16.xpose.msra.mxu0 0
        %513 = vmatprep.subr.bf16.mxu0 0
        %514 = vmatpush1.bf16.xpose.msra.mxu0 0
        %515 = vmatprep.subr.bf16.mxu0 0
        %516 = vmatpush1.bf16.xpose.msra.mxu0 0
        %517 = vmatprep.subr.bf16.mxu0 0
        %518 = vmatpush1.bf16.xpose.msra.mxu0 0
        %519 = vmatprep.subr.bf16.mxu0 0
        %520 = vmatpush1.bf16.xpose.msra.mxu0 0
        %521 = vmatprep.subr.bf16.mxu0 0
        %522 = vmatpush1.bf16.xpose.msra.mxu0 0
        %523 = vmatprep.subr.bf16.mxu0 0
        %524 = vmatpush1.bf16.xpose.msra.mxu0 0
        %525 = vmatprep.subr.bf16.mxu0 0
        %526 = vmatpush1.bf16.xpose.msra.mxu0 0
        %527 = vmatprep.subr.bf16.mxu0 0
        %528 = vmatpush1.bf16.xpose.msra.mxu0 0
        %529 = vmatprep.subr.bf16.mxu0 0
        %530 = vmatpush1.bf16.xpose.msra.mxu0 0
        %531 = vmatprep.subr.bf16.mxu0 0
        %532 = vmatpush1.bf16.xpose.msra.mxu0 0
        %533 = vmatprep.subr.bf16.mxu0 0
        %534 = vmatpush1.bf16.xpose.msra.mxu0 0
        %535 = vmatprep.mubr.bf16.mxu0 0
        %536 = vmatmul.mubr.bf16.gmra.mrb[0].mxu0 %v498
        %v537 = vpop.f32.mrb[0].mxu0
        %v538 = vadd.f32 %v492, %v537
        %v539 = vpop.f32.mrb[0].mxu0
        %v540 = vpop.f32.mrb[0].mxu0
        %v541 = vpop.f32.mrb[0].mxu0
        %542 = vdwg.mxu0
        %v543 = vsel %vm496, %v538, -inf
        %544 = vmax.xlane.f32.xlu0 %v543
        %v545 = vpop.xlane.xlu0 %544
        %v546 = vsub.f32 %v538, %v545
        %v547 = vmul.f32 %v546, 1.442695
        %v548 = vpow.pop %v547
        %v549 = vsel %vm496, %v548, 0.0
        %550 = vadd.xlane.f32.xlu0 %v549
        %v551 = vpop.xlane.xlu0 %550
        %v552 = vrcp.pop %v551
        %v553 = vmul.f32 %v548, %v552
        %v554 = vpack.c.bf16 %v553, %v553
        %555 = vrot.lane.b32.xlu0 %v491, 64
        %v556 = vpop.permute.xlu0 %555
        %v558 = vsel %vm496, %v554, 0
        %vm560 = vcmask 1043456
        %v562 = vsel %vm560, %v556, 0
        %564 = vmatprep.subr.bf16.mxu0 0
        %565 = vmatpush1.bf16.msra.mxu0 %v562
        %566 = vmatprep.subr.bf16.mxu0 0
        %567 = vmatpush1.bf16.msra.mxu0 0
        %568 = vmatprep.subr.bf16.mxu0 0
        %569 = vmatpush1.bf16.msra.mxu0 0
        %570 = vmatprep.subr.bf16.mxu0 0
        %571 = vmatpush1.bf16.msra.mxu0 0
        %572 = vmatprep.subr.bf16.mxu0 0
        %573 = vmatpush1.bf16.msra.mxu0 0
        %574 = vmatprep.subr.bf16.mxu0 0
        %575 = vmatpush1.bf16.msra.mxu0 0
        %576 = vmatprep.subr.bf16.mxu0 0
        %577 = vmatpush1.bf16.msra.mxu0 0
        %578 = vmatprep.subr.bf16.mxu0 0
        %579 = vmatpush1.bf16.msra.mxu0 0
        %580 = vmatprep.subr.bf16.mxu0 0
        %581 = vmatpush1.bf16.msra.mxu0 0
        %582 = vmatprep.subr.bf16.mxu0 0
        %583 = vmatpush1.bf16.msra.mxu0 0
        %584 = vmatprep.subr.bf16.mxu0 0
        %585 = vmatpush1.bf16.msra.mxu0 0
        %586 = vmatprep.subr.bf16.mxu0 0
        %587 = vmatpush1.bf16.msra.mxu0 0
        %588 = vmatprep.subr.bf16.mxu0 0
        %589 = vmatpush1.bf16.msra.mxu0 0
        %590 = vmatprep.subr.bf16.mxu0 0
        %591 = vmatpush1.bf16.msra.mxu0 0
        %592 = vmatprep.subr.bf16.mxu0 0
        %593 = vmatpush1.bf16.msra.mxu0 0
        %594 = vmatprep.subr.bf16.mxu0 0
        %595 = vmatpush1.bf16.msra.mxu0 0
        %596 = vmatprep.mubr.bf16.mxu0 0
        %597 = vmatmul.mubr.bf16.gmra.mrb[0].mxu0 %v558
        %v598 = vpop.f32.mrb[0].mxu0
        %v599 = vadd.f32 0.0, %v598
        %v600 = vpop.f32.mrb[0].mxu0
        %v601 = vpop.f32.mrb[0].mxu0
        %v602 = vpop.f32.mrb[0].mxu0
        %603 = vdwg.mxu0
        %604 = vrot.lane.b32.xlu0 %v491, 120
        %v605 = vpop.permute.xlu0 %604
        %606 = vrot.lane.b32.xlu0 %v491, 88
        %v607 = vpop.permute.xlu0 %606
        %v609 = vsel %vm496, %v605, 0
        %v612 = vsel %vm496, %v607, 0
        %614 = vmatprep.subr.bf16.mxu0 0
        %615 = vmatpush1.bf16.xpose.msra.mxu0 %v612
        %616 = vmatprep.subr.bf16.mxu0 0
        %617 = vmatpush1.bf16.xpose.msra.mxu0 0
        %618 = vmatprep.subr.bf16.mxu0 0
        %619 = vmatpush1.bf16.xpose.msra.mxu0 0
        %620 = vmatprep.subr.bf16.mxu0 0
        %621 = vmatpush1.bf16.xpose.msra.mxu0 0
        %622 = vmatprep.subr.bf16.mxu0 0
        %623 = vmatpush1.bf16.xpose.msra.mxu0 0
        %624 = vmatprep.subr.bf16.mxu0 0
        %625 = vmatpush1.bf16.xpose.msra.mxu0 0
        %626 = vmatprep.subr.bf16.mxu0 0
        %627 = vmatpush1.bf16.xpose.msra.mxu0 0
        %628 = vmatprep.subr.bf16.mxu0 0
        %629 = vmatpush1.bf16.xpose.msra.mxu0 0
        %630 = vmatprep.subr.bf16.mxu0 0
        %631 = vmatpush1.bf16.xpose.msra.mxu0 0
        %632 = vmatprep.subr.bf16.mxu0 0
        %633 = vmatpush1.bf16.xpose.msra.mxu0 0
        %634 = vmatprep.subr.bf16.mxu0 0
        %635 = vmatpush1.bf16.xpose.msra.mxu0 0
        %636 = vmatprep.subr.bf16.mxu0 0
        %637 = vmatpush1.bf16.xpose.msra.mxu0 0
        %638 = vmatprep.subr.bf16.mxu0 0
        %639 = vmatpush1.bf16.xpose.msra.mxu0 0
        %640 = vmatprep.subr.bf16.mxu0 0
        %641 = vmatpush1.bf16.xpose.msra.mxu0 0
        %642 = vmatprep.subr.bf16.mxu0 0
        %643 = vmatpush1.bf16.xpose.msra.mxu0 0
        %644 = vmatprep.subr.bf16.mxu0 0
        %645 = vmatpush1.bf16.xpose.msra.mxu0 0
        %646 = vmatprep.mubr.bf16.mxu0 0
        %647 = vmatmul.mubr.bf16.gmra.mrb[0].mxu0 %v609
        %v648 = vpop.f32.mrb[0].mxu0
        %v649 = vadd.f32 %v492, %v648
        %v650 = vpop.f32.mrb[0].mxu0
        %v651 = vpop.f32.mrb[0].mxu0
        %v652 = vpop.f32.mrb[0].mxu0
        %653 = vdwg.mxu0
        %v654 = vsel %vm496, %v649, -inf
        %655 = vmax.xlane.f32.xlu0 %v654
        %v656 = vpop.xlane.xlu0 %655
        %v657 = vsub.f32 %v649, %v656
        %v658 = vmul.f32 %v657, 1.442695
        %v659 = vpow.pop %v658
        %v660 = vsel %vm496, %v659, 0.0
        %661 = vadd.xlane.f32.xlu0 %v660
        %v662 = vpop.xlane.xlu0 %661
        %v663 = vrcp.pop %v662
        %v664 = vmul.f32 %v659, %v663
        %v665 = vpack.c.bf16 %v664, %v664
        %666 = vrot.lane.b32.xlu0 %v491, 56
        %v667 = vpop.permute.xlu0 %666
        %v669 = vsel %vm496, %v665, 0
        %v672 = vsel %vm560, %v667, 0
        %674 = vmatprep.subr.bf16.mxu0 0
        %675 = vmatpush1.bf16.msra.mxu0 %v672
        %676 = vmatprep.subr.bf16.mxu0 0
        %677 = vmatpush1.bf16.msra.mxu0 0
        %678 = vmatprep.subr.bf16.mxu0 0
        %679 = vmatpush1.bf16.msra.mxu0 0
        %680 = vmatprep.subr.bf16.mxu0 0
        %681 = vmatpush1.bf16.msra.mxu0 0
        %682 = vmatprep.subr.bf16.mxu0 0
        %683 = vmatpush1.bf16.msra.mxu0 0
        %684 = vmatprep.subr.bf16.mxu0 0
        %685 = vmatpush1.bf16.msra.mxu0 0
        %686 = vmatprep.subr.bf16.mxu0 0
        %687 = vmatpush1.bf16.msra.mxu0 0
        %688 = vmatprep.subr.bf16.mxu0 0
        %689 = vmatpush1.bf16.msra.mxu0 0
        %690 = vmatprep.subr.bf16.mxu0 0
        %691 = vmatpush1.bf16.msra.mxu0 0
        %692 = vmatprep.subr.bf16.mxu0 0
        %693 = vmatpush1.bf16.msra.mxu0 0
        %694 = vmatprep.subr.bf16.mxu0 0
        %695 = vmatpush1.bf16.msra.mxu0 0
        %696 = vmatprep.subr.bf16.mxu0 0
        %697 = vmatpush1.bf16.msra.mxu0 0
        %698 = vmatprep.subr.bf16.mxu0 0
        %699 = vmatpush1.bf16.msra.mxu0 0
        %700 = vmatprep.subr.bf16.mxu0 0
        %701 = vmatpush1.bf16.msra.mxu0 0
        %702 = vmatprep.subr.bf16.mxu0 0
        %703 = vmatpush1.bf16.msra.mxu0 0
        %704 = vmatprep.subr.bf16.mxu0 0
        %705 = vmatpush1.bf16.msra.mxu0 0
        %706 = vmatprep.mubr.bf16.mxu0 0
        %707 = vmatmul.mubr.bf16.gmra.mrb[0].mxu0 %v669
        %v708 = vpop.f32.mrb[0].mxu0
        %v709 = vadd.f32 0.0, %v708
        %v710 = vpop.f32.mrb[0].mxu0
        %v711 = vpop.f32.mrb[0].mxu0
        %v712 = vpop.f32.mrb[0].mxu0
        %713 = vdwg.mxu0
        %714 = vrot.lane.b32.xlu0 %v491, 112
        %v715 = vpop.permute.xlu0 %714
        %716 = vrot.lane.b32.xlu0 %v491, 80
        %v717 = vpop.permute.xlu0 %716
        %v719 = vsel %vm496, %v715, 0
        %v722 = vsel %vm496, %v717, 0
        %724 = vmatprep.subr.bf16.mxu0 0
        %725 = vmatpush1.bf16.xpose.msra.mxu0 %v722
        %726 = vmatprep.subr.bf16.mxu0 0
        %727 = vmatpush1.bf16.xpose.msra.mxu0 0
        %728 = vmatprep.subr.bf16.mxu0 0
        %729 = vmatpush1.bf16.xpose.msra.mxu0 0
        %730 = vmatprep.subr.bf16.mxu0 0
        %731 = vmatpush1.bf16.xpose.msra.mxu0 0
        %732 = vmatprep.subr.bf16.mxu0 0
        %733 = vmatpush1.bf16.xpose.msra.mxu0 0
        %734 = vmatprep.subr.bf16.mxu0 0
        %735 = vmatpush1.bf16.xpose.msra.mxu0 0
        %736 = vmatprep.subr.bf16.mxu0 0
        %737 = vmatpush1.bf16.xpose.msra.mxu0 0
        %738 = vmatprep.subr.bf16.mxu0 0
        %739 = vmatpush1.bf16.xpose.msra.mxu0 0
        %740 = vmatprep.subr.bf16.mxu0 0
        %741 = vmatpush1.bf16.xpose.msra.mxu0 0
        %742 = vmatprep.subr.bf16.mxu0 0
        %743 = vmatpush1.bf16.xpose.msra.mxu0 0
        %744 = vmatprep.subr.bf16.mxu0 0
        %745 = vmatpush1.bf16.xpose.msra.mxu0 0
        %746 = vmatprep.subr.bf16.mxu0 0
        %747 = vmatpush1.bf16.xpose.msra.mxu0 0
        %748 = vmatprep.subr.bf16.mxu0 0
        %749 = vmatpush1.bf16.xpose.msra.mxu0 0
        %750 = vmatprep.subr.bf16.mxu0 0
        %751 = vmatpush1.bf16.xpose.msra.mxu0 0
        %752 = vmatprep.subr.bf16.mxu0 0
        %753 = vmatpush1.bf16.xpose.msra.mxu0 0
        %754 = vmatprep.subr.bf16.mxu0 0
        %755 = vmatpush1.bf16.xpose.msra.mxu0 0
        %756 = vmatprep.mubr.bf16.mxu0 0
        %757 = vmatmul.mubr.bf16.gmra.mrb[0].mxu0 %v719
        %v758 = vpop.f32.mrb[0].mxu0
        %v759 = vadd.f32 %v492, %v758
        %v760 = vpop.f32.mrb[0].mxu0
        %v761 = vpop.f32.mrb[0].mxu0
        %v762 = vpop.f32.mrb[0].mxu0
        %763 = vdwg.mxu0
        %v764 = vsel %vm496, %v759, -inf
        %765 = vmax.xlane.f32.xlu0 %v764
        %v766 = vpop.xlane.xlu0 %765
        %v767 = vsub.f32 %v759, %v766
        %v768 = vmul.f32 %v767, 1.442695
        %v769 = vpow.pop %v768
        %v770 = vsel %vm496, %v769, 0.0
        %771 = vadd.xlane.f32.xlu0 %v770
        %v772 = vpop.xlane.xlu0 %771
        %v773 = vrcp.pop %v772
        %v774 = vmul.f32 %v769, %v773
        %v775 = vpack.c.bf16 %v774, %v774
        %776 = vrot.lane.b32.xlu0 %v491, 48
        %v777 = vpop.permute.xlu0 %776
        %v779 = vsel %vm496, %v775, 0
        %v782 = vsel %vm560, %v777, 0
        %784 = vmatprep.subr.bf16.mxu0 0
        %785 = vmatpush1.bf16.msra.mxu0 %v782
        %786 = vmatprep.subr.bf16.mxu0 0
        %787 = vmatpush1.bf16.msra.mxu0 0
        %788 = vmatprep.subr.bf16.mxu0 0
        %789 = vmatpush1.bf16.msra.mxu0 0
        %790 = vmatprep.subr.bf16.mxu0 0
        %791 = vmatpush1.bf16.msra.mxu0 0
        %792 = vmatprep.subr.bf16.mxu0 0
        %793 = vmatpush1.bf16.msra.mxu0 0
        %794 = vmatprep.subr.bf16.mxu0 0
        %795 = vmatpush1.bf16.msra.mxu0 0
        %796 = vmatprep.subr.bf16.mxu0 0
        %797 = vmatpush1.bf16.msra.mxu0 0
        %798 = vmatprep.subr.bf16.mxu0 0
        %799 = vmatpush1.bf16.msra.mxu0 0
        %800 = vmatprep.subr.bf16.mxu0 0
        %801 = vmatpush1.bf16.msra.mxu0 0
        %802 = vmatprep.subr.bf16.mxu0 0
        %803 = vmatpush1.bf16.msra.mxu0 0
        %804 = vmatprep.subr.bf16.mxu0 0
        %805 = vmatpush1.bf16.msra.mxu0 0
        %806 = vmatprep.subr.bf16.mxu0 0
        %807 = vmatpush1.bf16.msra.mxu0 0
        %808 = vmatprep.subr.bf16.mxu0 0
        %809 = vmatpush1.bf16.msra.mxu0 0
        %810 = vmatprep.subr.bf16.mxu0 0
        %811 = vmatpush1.bf16.msra.mxu0 0
        %812 = vmatprep.subr.bf16.mxu0 0
        %813 = vmatpush1.bf16.msra.mxu0 0
        %814 = vmatprep.subr.bf16.mxu0 0
        %815 = vmatpush1.bf16.msra.mxu0 0
        %816 = vmatprep.mubr.bf16.mxu0 0
        %817 = vmatmul.mubr.bf16.gmra.mrb[0].mxu0 %v779
        %v818 = vpop.f32.mrb[0].mxu0
        %v819 = vadd.f32 0.0, %v818
        %v820 = vpop.f32.mrb[0].mxu0
        %v821 = vpop.f32.mrb[0].mxu0
        %v822 = vpop.f32.mrb[0].mxu0
        %823 = vdwg.mxu0
        %824 = vrot.lane.b32.xlu0 %v491, 104
        %v825 = vpop.permute.xlu0 %824
        %826 = vrot.lane.b32.xlu0 %v491, 72
        %v827 = vpop.permute.xlu0 %826
        %v829 = vsel %vm496, %v825, 0
        %v832 = vsel %vm496, %v827, 0
        %834 = vmatprep.subr.bf16.mxu0 0
        %835 = vmatpush1.bf16.xpose.msra.mxu0 %v832
        %836 = vmatprep.subr.bf16.mxu0 0
        %837 = vmatpush1.bf16.xpose.msra.mxu0 0
        %838 = vmatprep.subr.bf16.mxu0 0
        %839 = vmatpush1.bf16.xpose.msra.mxu0 0
        %840 = vmatprep.subr.bf16.mxu0 0
        %841 = vmatpush1.bf16.xpose.msra.mxu0 0
        %842 = vmatprep.subr.bf16.mxu0 0
        %843 = vmatpush1.bf16.xpose.msra.mxu0 0
        %844 = vmatprep.subr.bf16.mxu0 0
        %845 = vmatpush1.bf16.xpose.msra.mxu0 0
        %846 = vmatprep.subr.bf16.mxu0 0
        %847 = vmatpush1.bf16.xpose.msra.mxu0 0
        %848 = vmatprep.subr.bf16.mxu0 0
        %849 = vmatpush1.bf16.xpose.msra.mxu0 0
        %850 = vmatprep.subr.bf16.mxu0 0
        %851 = vmatpush1.bf16.xpose.msra.mxu0 0
        %852 = vmatprep.subr.bf16.mxu0 0
        %853 = vmatpush1.bf16.xpose.msra.mxu0 0
        %854 = vmatprep.subr.bf16.mxu0 0
        %855 = vmatpush1.bf16.xpose.msra.mxu0 0
        %856 = vmatprep.subr.bf16.mxu0 0
        %857 = vmatpush1.bf16.xpose.msra.mxu0 0
        %858 = vmatprep.subr.bf16.mxu0 0
        %859 = vmatpush1.bf16.xpose.msra.mxu0 0
        %860 = vmatprep.subr.bf16.mxu0 0
        %861 = vmatpush1.bf16.xpose.msra.mxu0 0
        %862 = vmatprep.subr.bf16.mxu0 0
        %863 = vmatpush1.bf16.xpose.msra.mxu0 0
        %864 = vmatprep.subr.bf16.mxu0 0
        %865 = vmatpush1.bf16.xpose.msra.mxu0 0
        %866 = vmatprep.mubr.bf16.mxu0 0
        %867 = vmatmul.mubr.bf16.gmra.mrb[0].mxu0 %v829
        %v868 = vpop.f32.mrb[0].mxu0
        %v869 = vadd.f32 %v492, %v868
        %v870 = vpop.f32.mrb[0].mxu0
        %v871 = vpop.f32.mrb[0].mxu0
        %v872 = vpop.f32.mrb[0].mxu0
        %873 = vdwg.mxu0
        %v874 = vsel %vm496, %v869, -inf
        %875 = vmax.xlane.f32.xlu0 %v874
        %v876 = vpop.xlane.xlu0 %875
        %v877 = vsub.f32 %v869, %v876
        %v878 = vmul.f32 %v877, 1.442695
        %v879 = vpow.pop %v878
        %v880 = vsel %vm496, %v879, 0.0
        %881 = vadd.xlane.f32.xlu0 %v880
        %v882 = vpop.xlane.xlu0 %881
        %v883 = vrcp.pop %v882
        %v884 = vmul.f32 %v879, %v883
        %v885 = vpack.c.bf16 %v884, %v884
        %886 = vrot.lane.b32.xlu0 %v491, 40
        %v887 = vpop.permute.xlu0 %886
        %v889 = vsel %vm496, %v885, 0
        %v892 = vsel %vm560, %v887, 0
        %894 = vmatprep.subr.bf16.mxu0 0
        %895 = vmatpush1.bf16.msra.mxu0 %v892
        %896 = vmatprep.subr.bf16.mxu0 0
        %897 = vmatpush1.bf16.msra.mxu0 0
        %898 = vmatprep.subr.bf16.mxu0 0
        %899 = vmatpush1.bf16.msra.mxu0 0
        %900 = vmatprep.subr.bf16.mxu0 0
        %901 = vmatpush1.bf16.msra.mxu0 0
        %902 = vmatprep.subr.bf16.mxu0 0
        %903 = vmatpush1.bf16.msra.mxu0 0
        %904 = vmatprep.subr.bf16.mxu0 0
        %905 = vmatpush1.bf16.msra.mxu0 0
        %906 = vmatprep.subr.bf16.mxu0 0
        %907 = vmatpush1.bf16.msra.mxu0 0
        %908 = vmatprep.subr.bf16.mxu0 0
        %909 = vmatpush1.bf16.msra.mxu0 0
        %910 = vmatprep.subr.bf16.mxu0 0
        %911 = vmatpush1.bf16.msra.mxu0 0
        %912 = vmatprep.subr.bf16.mxu0 0
        %913 = vmatpush1.bf16.msra.mxu0 0
        %914 = vmatprep.subr.bf16.mxu0 0
        %915 = vmatpush1.bf16.msra.mxu0 0
        %916 = vmatprep.subr.bf16.mxu0 0
        %917 = vmatpush1.bf16.msra.mxu0 0
        %918 = vmatprep.subr.bf16.mxu0 0
        %919 = vmatpush1.bf16.msra.mxu0 0
        %920 = vmatprep.subr.bf16.mxu0 0
        %921 = vmatpush1.bf16.msra.mxu0 0
        %922 = vmatprep.subr.bf16.mxu0 0
        %923 = vmatpush1.bf16.msra.mxu0 0
        %924 = vmatprep.subr.bf16.mxu0 0
        %925 = vmatpush1.bf16.msra.mxu0 0
        %926 = vmatprep.mubr.bf16.mxu0 0
        %927 = vmatmul.mubr.bf16.gmra.mrb[0].mxu0 %v889
        %v928 = vpop.f32.mrb[0].mxu0
        %v929 = vadd.f32 0.0, %v928
        %v930 = vpop.f32.mrb[0].mxu0
        %v931 = vpop.f32.mrb[0].mxu0
        %v932 = vpop.f32.mrb[0].mxu0
        %933 = vdwg.mxu0
        %935 = vrot.lane.b32.xlu0 %v709, 8
        %v936 = vpop.permute.xlu0 %935
        %939 = vrot.lane.b32.xlu0 %v819, 16
        %v940 = vpop.permute.xlu0 %939
        %943 = vrot.lane.b32.xlu0 %v929, 24
        %v944 = vpop.permute.xlu0 %943
        %v946 = vsel %vm496, %v599, %v936
        %vm947 = vcmask 130048
        %v948 = vsel %vm947, %v946, %v940
        %vm949 = vcmask 195584
        %v950 = vsel %vm949, %v948, %v944
        %v951 = vpack.c.bf16 %v950, %v950
        %v952 = vld [vmem:[%s401] sm:$0xf]
        %v953 = vld [vmem:[%s401 + $0x4] sm:$0xf]
        %v954 = vld [vmem:[%s401 + $0x8] sm:$0xf]
        %v955 = vld [vmem:[%s401 + $0xc] sm:$0xf]
        %v956 = vlaneseq
        %v957 = vshrl.u32 %v956, 7
        %v958 = vsub.s32 1, %v957
        %v959 = vrot.slane %v424, %v958
        %v964 = vunpack.c.l.b16 %v952
        %v965 = vunpack.c.l.b16 %v953
        %v966 = vunpack.c.l.b16 %v954
        %v967 = vunpack.c.l.b16 %v955
        %v968 = vpack.c.b16 %v965, %v964
        %v969 = vpack.c.b16 %v967, %v966
        %v973 = vsel %vm447, %v951, 0
        %975 = vmatprep.subr.bf16.mxu0 0
        %976 = vmatpush1.bf16.msra.mxu0 %v968
        %977 = vmatprep.subr.bf16.mxu0 0
        %978 = vmatpush1.bf16.msra.mxu0 %v969
        %979 = vmatprep.subr.bf16.mxu0 0
        %980 = vmatpush1.bf16.msra.mxu0 0
        %981 = vmatprep.subr.bf16.mxu0 0
        %982 = vmatpush1.bf16.msra.mxu0 0
        %983 = vmatprep.subr.bf16.mxu0 0
        %984 = vmatpush1.bf16.msra.mxu0 0
        %985 = vmatprep.subr.bf16.mxu0 0
        %986 = vmatpush1.bf16.msra.mxu0 0
        %987 = vmatprep.subr.bf16.mxu0 0
        %988 = vmatpush1.bf16.msra.mxu0 0
        %989 = vmatprep.subr.bf16.mxu0 0
        %990 = vmatpush1.bf16.msra.mxu0 0
        %991 = vmatprep.subr.bf16.mxu0 0
        %992 = vmatpush1.bf16.msra.mxu0 0
        %993 = vmatprep.subr.bf16.mxu0 0
        %994 = vmatpush1.bf16.msra.mxu0 0
        %995 = vmatprep.subr.bf16.mxu0 0
        %996 = vmatpush1.bf16.msra.mxu0 0
        %997 = vmatprep.subr.bf16.mxu0 0
        %998 = vmatpush1.bf16.msra.mxu0 0
        %999 = vmatprep.subr.bf16.mxu0 0
        %1000 = vmatpush1.bf16.msra.mxu0 0
        %1001 = vmatprep.subr.bf16.mxu0 0
        %1002 = vmatpush1.bf16.msra.mxu0 0
        %1003 = vmatprep.subr.bf16.mxu0 0
        %1004 = vmatpush1.bf16.msra.mxu0 0
        %1005 = vmatprep.subr.bf16.mxu0 0
        %1006 = vmatpush1.bf16.msra.mxu0 0
        %1007 = vmatprep.mubr.bf16.mxu0 0
        %1008 = vmatmul.mubr.bf16.gmra.mrb[0].mxu0 %v973
        %v1009 = vpop.f32.mrb[0].mxu0
        %v1010 = vadd.f32 %v959, %v1009
        %v1011 = vpop.f32.mrb[0].mxu0
        %v1012 = vpop.f32.mrb[0].mxu0
        %v1013 = vpop.f32.mrb[0].mxu0
        %1014 = vdwg.mxu0
        %v1015 = vadd.f32 %v425, %v1010
        %v1016 = vsel %vm447, %v1015, 0.0
        %1017 = vadd.xlane.f32.xlu0 %v1016
        %v1018 = vpop.xlane.xlu0 %1017
        %v1019 = vrcp.pop 32.0
        %v1020 = vmul.f32 %v1018, %v1019
        %v1021 = vsub.f32 %v1015, %v1020
        %v1022 = vmul.f32 %v1021, %v1021
        %v1023 = vsel %vm447, %v1022, 0.0
        %1024 = vadd.xlane.f32.xlu0 %v1023
        %v1025 = vpop.xlane.xlu0 %1024
        %v1026 = vmul.f32 %v1025, %v1019
        %v1027 = vadd.f32 %v1026, 1e-05
        %v1028 = vrsqrt.pop %v1027
        %v1029 = vmul.f32 %v1021, %v1028
        %v1030 = vlaneseq
        %v1031 = vshrl.u32 %v1030, 7
        %v1032 = vsub.s32 2, %v1031
        %v1033 = vrot.slane %v424, %v1032
        %v1034 = vmul.f32 %v1029, %v1033
        %v1035 = vlaneseq
        %v1036 = vshrl.u32 %v1035, 7
        %v1037 = vsub.s32 3, %v1036
        %v1038 = vrot.slane %v424, %v1037
        %v1039 = vadd.f32 %v1034, %v1038
        %v1040 = vpack.c.bf16 %v1039, %v1039
        %v1041 = vld [vmem:[%s406] sm:$0xf]
        %v1042 = vld [vmem:[%s406 + $0x4] sm:$0xf]
        %v1043 = vld [vmem:[%s406 + $0x8] sm:$0xf]
        %v1044 = vld [vmem:[%s406 + $0xc] sm:$0xf]
        %v1045 = vlaneseq
        %v1046 = vshrl.u32 %v1045, 7
        %v1047 = vsub.s32 4, %v1046
        %v1048 = vrot.slane %v424, %v1047
        %v1053 = vunpack.c.l.b16 %v1041
        %v1054 = vunpack.c.l.b16 %v1042
        %v1055 = vunpack.c.l.b16 %v1043
        %v1056 = vunpack.c.l.b16 %v1044
        %v1057 = vpack.c.b16 %v1054, %v1053
        %v1058 = vpack.c.b16 %v1056, %v1055
        %v1062 = vsel %vm447, %v1040, 0
        %1064 = vmatprep.subr.bf16.mxu0 0
        %1065 = vmatpush1.bf16.msra.mxu0 %v1057
        %1066 = vmatprep.subr.bf16.mxu0 0
        %1067 = vmatpush1.bf16.msra.mxu0 %v1058
        %1068 = vmatprep.subr.bf16.mxu0 0
        %1069 = vmatpush1.bf16.msra.mxu0 0
        %1070 = vmatprep.subr.bf16.mxu0 0
        %1071 = vmatpush1.bf16.msra.mxu0 0
        %1072 = vmatprep.subr.bf16.mxu0 0
        %1073 = vmatpush1.bf16.msra.mxu0 0
        %1074 = vmatprep.subr.bf16.mxu0 0
        %1075 = vmatpush1.bf16.msra.mxu0 0
        %1076 = vmatprep.subr.bf16.mxu0 0
        %1077 = vmatpush1.bf16.msra.mxu0 0
        %1078 = vmatprep.subr.bf16.mxu0 0
        %1079 = vmatpush1.bf16.msra.mxu0 0
        %1080 = vmatprep.subr.bf16.mxu0 0
        %1081 = vmatpush1.bf16.msra.mxu0 0
        %1082 = vmatprep.subr.bf16.mxu0 0
        %1083 = vmatpush1.bf16.msra.mxu0 0
        %1084 = vmatprep.subr.bf16.mxu0 0
        %1085 = vmatpush1.bf16.msra.mxu0 0
        %1086 = vmatprep.subr.bf16.mxu0 0
        %1087 = vmatpush1.bf16.msra.mxu0 0
        %1088 = vmatprep.subr.bf16.mxu0 0
        %1089 = vmatpush1.bf16.msra.mxu0 0
        %1090 = vmatprep.subr.bf16.mxu0 0
        %1091 = vmatpush1.bf16.msra.mxu0 0
        %1092 = vmatprep.subr.bf16.mxu0 0
        %1093 = vmatpush1.bf16.msra.mxu0 0
        %1094 = vmatprep.subr.bf16.mxu0 0
        %1095 = vmatpush1.bf16.msra.mxu0 0
        %1096 = vmatprep.mubr.bf16.mxu0 0
        %1097 = vmatmul.mubr.bf16.gmra.mrb[0].mxu0 %v1062
        %v1098 = vpop.f32.mrb[0].mxu0
        %v1099 = vadd.f32 %v1048, %v1098
        %v1100 = vpop.f32.mrb[0].mxu0
        %v1101 = vpop.f32.mrb[0].mxu0
        %v1102 = vpop.f32.mrb[0].mxu0
        %1103 = vdwg.mxu0
        %v1104 = vmax.f32 %v1099, 0.0
        %v1105 = vpack.c.bf16 %v1104, %v1104
        %v1106 = vld [vmem:[%s411] sm:$0xf]
        %v1107 = vld [vmem:[%s411 + $0x4] sm:$0xf]
        %v1108 = vld [vmem:[%s411 + $0x8] sm:$0xf]
        %v1109 = vld [vmem:[%s411 + $0xc] sm:$0xf]
        %v1110 = vld [vmem:[%s411 + $0x10] sm:$0xf]
        %v1111 = vld [vmem:[%s411 + $0x14] sm:$0xf]
        %v1112 = vld [vmem:[%s411 + $0x18] sm:$0xf]
        %v1113 = vld [vmem:[%s411 + $0x1c] sm:$0xf]
        %v1114 = vlaneseq
        %v1115 = vshrl.u32 %v1114, 7
        %v1116 = vsub.s32 5, %v1115
        %v1117 = vrot.slane %v424, %v1116
        %v1126 = vunpack.c.l.b16 %v1106
        %v1127 = vunpack.c.l.b16 %v1107
        %v1128 = vunpack.c.l.b16 %v1108
        %v1129 = vunpack.c.l.b16 %v1109
        %v1130 = vunpack.c.l.b16 %v1110
        %v1131 = vunpack.c.l.b16 %v1111
        %v1132 = vunpack.c.l.b16 %v1112
        %v1133 = vunpack.c.l.b16 %v1113
        %v1134 = vpack.c.b16 %v1127, %v1126
        %v1135 = vpack.c.b16 %v1129, %v1128
        %v1136 = vpack.c.b16 %v1131, %v1130
        %v1137 = vpack.c.b16 %v1133, %v1132
        %vm1142 = vcmask 523264
        %v1144 = vsel %vm1142, %v1105, 0
        %1146 = vmatprep.subr.bf16.mxu0 0
        %1147 = vmatpush1.bf16.msra.mxu0 %v1134
        %1148 = vmatprep.subr.bf16.mxu0 0
        %1149 = vmatpush1.bf16.msra.mxu0 %v1135
        %1150 = vmatprep.subr.bf16.mxu0 0
        %1151 = vmatpush1.bf16.msra.mxu0 %v1136
        %1152 = vmatprep.subr.bf16.mxu0 0
        %1153 = vmatpush1.bf16.msra.mxu0 %v1137
        %1154 = vmatprep.subr.bf16.mxu0 0
        %1155 = vmatpush1.bf16.msra.mxu0 0
        %1156 = vmatprep.subr.bf16.mxu0 0
        %1157 = vmatpush1.bf16.msra.mxu0 0
        %1158 = vmatprep.subr.bf16.mxu0 0
        %1159 = vmatpush1.bf16.msra.mxu0 0
        %1160 = vmatprep.subr.bf16.mxu0 0
        %1161 = vmatpush1.bf16.msra.mxu0 0
        %1162 = vmatprep.subr.bf16.mxu0 0
        %1163 = vmatpush1.bf16.msra.mxu0 0
        %1164 = vmatprep.subr.bf16.mxu0 0
        %1165 = vmatpush1.bf16.msra.mxu0 0
        %1166 = vmatprep.subr.bf16.mxu0 0
        %1167 = vmatpush1.bf16.msra.mxu0 0
        %1168 = vmatprep.subr.bf16.mxu0 0
        %1169 = vmatpush1.bf16.msra.mxu0 0
        %1170 = vmatprep.subr.bf16.mxu0 0
        %1171 = vmatpush1.bf16.msra.mxu0 0
        %1172 = vmatprep.subr.bf16.mxu0 0
        %1173 = vmatpush1.bf16.msra.mxu0 0
        %1174 = vmatprep.subr.bf16.mxu0 0
        %1175 = vmatpush1.bf16.msra.mxu0 0
        %1176 = vmatprep.subr.bf16.mxu0 0
        %1177 = vmatpush1.bf16.msra.mxu0 0
        %1178 = vmatprep.mubr.bf16.mxu0 0
        %1179 = vmatmul.mubr.bf16.gmra.mrb[0].mxu0 %v1144
        %v1180 = vpop.f32.mrb[0].mxu0
        %v1181 = vadd.f32 %v1117, %v1180
        %v1182 = vpop.f32.mrb[0].mxu0
        %v1183 = vpop.f32.mrb[0].mxu0
        %v1184 = vpop.f32.mrb[0].mxu0
        %1185 = vdwg.mxu0
        %v1186 = vadd.f32 %v1039, %v1181
        %v1187 = vsel %vm447, %v1186, 0.0
        %1188 = vadd.xlane.f32.xlu0 %v1187
        %v1189 = vpop.xlane.xlu0 %1188
        %v1190 = vmul.f32 %v1189, %v1019
        %v1191 = vsub.f32 %v1186, %v1190
        %v1192 = vmul.f32 %v1191, %v1191
        %v1193 = vsel %vm447, %v1192, 0.0
        %1194 = vadd.xlane.f32.xlu0 %v1193
        %v1195 = vpop.xlane.xlu0 %1194
        %v1196 = vmul.f32 %v1195, %v1019
        %v1197 = vadd.f32 %v1196, 1e-05
        %v1198 = vrsqrt.pop %v1197
        %v1199 = vmul.f32 %v1191, %v1198
        %v1200 = vlaneseq
        %v1201 = vshrl.u32 %v1200, 7
        %v1202 = vsub.s32 6, %v1201
        %v1203 = vrot.slane %v424, %v1202
        %v1204 = vmul.f32 %v1199, %v1203
        %v1205 = vlaneseq
        %v1206 = vshrl.u32 %v1205, 7
        %v1207 = vsub.s32 7, %v1206
        %v1208 = vrot.slane %v424, %v1207
        %v1209 = vadd.f32 %v1204, %v1208
        %1210 = vst.msk [vmem:[%s391] sm:$0xff] %vm447, %v1209
        %s1211 = sand.u32 %s222, 1
        %s1212 = scalar_lea.sflag [#allocation4], %s1211
        %s1213 = sand.u32 %s222, 1
        %s1214 = smul.addr %s1213, 8
        %s1215 = scalar_lea.vmem [#allocation7], %s1214
        // Predicated region
        $region61: #{tpu_custom_call.1} parent=47 // pred_check
          %p1216 = pneg %p232
        $region62: #{tpu_custom_call.1} parent=47 // pred_check_branch
          %1218 = sbr.rel (%p1216) target = $region64
        $region63: #{tpu_custom_call.1} parent=47 // pred_region
          %s1220 = ssub.s32 128, 128
          %1221 = vsyncadd %s1212, %s1220
          %s1222 = smul.addr %s29, 128
          %s1223 = scalar_lea.hbm %s7, %s1222
          %s1225 = sshll.u32 %s1215, 4
          %s1226 = int_to_ptr.vmem [resolvable:$true] %s1225
          %1228 = dma.vmem_to_hbm [thread:$0]  %s1226, 128, %s1223, %s1212
        $region64: #{tpu_custom_call.1} parent=47 // pred_fallthru
          _
      $region48: #{tpu_custom_call.1} parent=5 // pred_fallthru
        _
      %p1229 = scmp.le.s32.totalorder 2, %s20
      // Predicated region
      $region65: #{tpu_custom_call.1} parent=5 // pred_check
        %p1230 = pneg %p1229
      $region66: #{tpu_custom_call.1} parent=5 // pred_check_branch
        %1232 = sbr.rel (%p1230) target = $region68
      $region67: #{tpu_custom_call.1} parent=5 // pred_region
        %s1233 = ssub.s32 %s20, 2
        // Predicated region
        $region69: #{tpu_custom_call.1} parent=67 // pred_check
          %p1234 = pneg %p238
        $region70: #{tpu_custom_call.1} parent=67 // pred_check_branch
          %1236 = sbr.rel (%p1234) target = $region72
        $region71: #{tpu_custom_call.1} parent=67 // pred_region
          %s1237 = sand.u32 %s223, 1
          %s1238 = scalar_lea.sflag [#allocation4], %s1237
          %s1239 = sand.u32 %s223, 1
          %s1240 = smul.addr %s1239, 8
          %s1241 = scalar_lea.vmem [#allocation7], %s1240
          %1242 = dma.done %s1238, 128
        $region72: #{tpu_custom_call.1} parent=67 // pred_fallthru
          _
      $region68: #{tpu_custom_call.1} parent=5 // pred_fallthru
        _
    $region6: #{tpu_custom_call.1} parent=1 // loop_footer
      %s24 = sadd.s32 1, %s20
    $region7: #{tpu_custom_call.1} parent=1 // loop_footer_branch
      %19 = sbr.rel target = $region3
    $region8: #{tpu_custom_call.1} parent=1 // loop_exit
      _
    %1243 = vsyncpa [#allocation3], 1
    %s1244 = scalar_lea.sflag [#allocation3], 1
    %1245 = vsyncpa %s1244, 1
    %1246 = vsyncpa [#allocation6], 1
    %1247 = vsyncpa [#allocation4], 1
    %s1248 = scalar_lea.sflag [#allocation4], 1
    %1249 = vsyncpa %s1248, 1

</llo_original>
